<compile_context>
chip_gen: v6e
topology: v6e:2x2x1
jax: 0.10.0
libtpu: 0.0.40
codegen_flags: <defaults>
</compile_context>

<pallas_src>
import jax
import jax.numpy as jnp
from jax.experimental import pallas as pl
from jax.experimental.pallas import tpu as pltpu

IN, H1, H2, OUT = 100, 256, 512, 784
IN_PAD, OUT_PAD = 128, 896  # lane-aligned (multiples of 128)


def _generator_kernel(x_ref, w1_ref, b1_ref, w2_ref, b2_ref, w3_ref, b3_ref, o_ref):
    # Layer 1: Linear(128->256) + ReLU. bf16 operands, f32 MXU accumulate,
    # bias-add / ReLU in f32 (VPU).
    h1 = jnp.dot(x_ref[...], w1_ref[...], preferred_element_type=jnp.float32)
    h1 = jnp.maximum(h1 + b1_ref[...], 0.0)
    # Layer 2: Linear(256->512) + ReLU.
    h2 = jnp.dot(h1.astype(jnp.bfloat16), w2_ref[...], preferred_element_type=jnp.float32)
    h2 = jnp.maximum(h2 + b2_ref[...], 0.0)
    # Layer 3: Linear(512->896-padded) + Tanh (f32 EUP).
    # Store bf16: lane-dense, and halves output HBM traffic (store-bound on v6e at f32).
    h3 = jnp.dot(h2.astype(jnp.bfloat16), w3_ref[...], preferred_element_type=jnp.float32)
    o_ref[...] = jnp.tanh(h3 + b3_ref[...]).astype(o_ref.dtype)


def prepare_params(params):
    """One-time pad/cast of f32 (in,out) weights and (1,out) biases to kernel layouts.
    Padded weight rows / output columns are zero, so the math is unchanged."""
    w1, b1, w2, b2, w3, b3 = params
    w1p = jnp.zeros((IN_PAD, H1), jnp.bfloat16).at[:IN, :].set(w1.astype(jnp.bfloat16))
    w2p = w2.astype(jnp.bfloat16)
    w3p = jnp.zeros((H2, OUT_PAD), jnp.bfloat16).at[:, :OUT].set(w3.astype(jnp.bfloat16))
    b1p = b1.astype(jnp.float32)
    b2p = b2.astype(jnp.float32)
    b3p = jnp.zeros((1, OUT_PAD), jnp.float32).at[:, :OUT].set(b3.astype(jnp.float32))
    return (w1p, b1p, w2p, b2p, w3p, b3p)


@jax.jit
def generator_forward(x, prepared_params):
    """x: (B, 100) float32 latent. prepared_params: output of prepare_params().
    Returns (B, 1, 28, 28) float32."""
    w1p, b1p, w2p, b2p, w3p, b3p = prepared_params
    B = x.shape[0]

    # Batch tile: multiple of 16 (bf16 sublane packing). Aim for >= 2 grid steps so both
    # v7x TensorCores get work; use 512-row tiles for large batches to amortize the
    # ~0.35 us per-grid-step overhead, 256 otherwise.
    target_tb = 512 if B >= 2048 else 256
    n_tiles = max(2, pl.cdiv(B, target_tb))
    TB = max(16, ((pl.cdiv(B, n_tiles) + 15) // 16) * 16)
    B_pad = pl.cdiv(B, TB) * TB

    # Per-call input pad/cast (small: B_pad x 128 bf16).
    xp = jnp.zeros((B_pad, IN_PAD), jnp.bfloat16).at[:B, :IN].set(x.astype(jnp.bfloat16))

    # Weights/biases: constant index_map -> DMA'd once, resident in VMEM across batch tiles.
    def resident(a):
        return pl.BlockSpec(a.shape, lambda i: (0,) * a.ndim)

    out_padded = pl.pallas_call(
        _generator_kernel,
        out_shape=jax.ShapeDtypeStruct((B_pad, OUT_PAD), jnp.bfloat16),
        grid=(B_pad // TB,),
        in_specs=[
            pl.BlockSpec((TB, IN_PAD), lambda i: (i, 0)),
            resident(w1p), resident(b1p),
            resident(w2p), resident(b2p),
            resident(w3p), resident(b3p),
        ],
        out_specs=pl.BlockSpec((TB, OUT_PAD), lambda i: (i, 0)),
        compiler_params=pltpu.CompilerParams(
            dimension_semantics=("parallel",),
            vmem_limit_bytes=32 << 20,
        ),
    )(xp, w1p, b1p, w2p, b2p, w3p, b3p)

    # Single fused pass: slice padding away + cast bf16->f32 + view as (B, 1, 28, 28).
    # TODO(synk): if the consumer accepts (B, 784) bf16, return out_padded[:B, :OUT] directly
    # and skip this copy entirely.
    return out_padded[:B, :OUT].astype(jnp.float32).reshape(B, 1, 28, 28)


def init_params(key):
    """Deterministic init matching PyTorch nn.Linear default (U(-1/sqrt(in), 1/sqrt(in)))."""
    dims = [(IN, H1), (H1, H2), (H2, OUT)]
    params = []
    for fan_in, fan_out in dims:
        key, kw, kb = jax.random.split(key, 3)
        bound = 1.0 / (fan_in ** 0.5)
        w = jax.random.uniform(kw, (fan_in, fan_out), jnp.float32, -bound, bound)
        b = jax.random.uniform(kb, (1, fan_out), jnp.float32, -bound, bound)
        params += [w, b]
    return tuple(params)


def _reference_forward(x, params):
    """Plain-JAX reference with the same bf16-operand / f32-accumulate matmuls but an
    f32 tanh output (the kernel additionally rounds the output to bf16)."""
    w1, b1, w2, b2, w3, b3 = params
    h = jnp.dot(x.astype(jnp.bfloat16), w1.astype(jnp.bfloat16),
                preferred_element_type=jnp.float32)
    h = jnp.maximum(h + b1, 0.0)
    h = jnp.dot(h.astype(jnp.bfloat16), w2.astype(jnp.bfloat16),
                preferred_element_type=jnp.float32)
    h = jnp.maximum(h + b2, 0.0)
    out = jnp.dot(h.astype(jnp.bfloat16), w3.astype(jnp.bfloat16),
                  preferred_element_type=jnp.float32)
    out = jnp.tanh(out + b3)
    return out.reshape(x.shape[0], 1, 28, 28)


if __name__ == "__main__":
    key = jax.random.PRNGKey(0)
    k_params, k_x = jax.random.split(key)

    params = init_params(k_params)
    prepared = prepare_params(params)  # one-time pad/cast, reused across calls
    batch = 4
    x = jax.random.normal(k_x, (batch, 100), jnp.float32)

    out = generator_forward(x, prepared)
    out = jax.block_until_ready(out)

    ref = jax.block_until_ready(_reference_forward(x, params))
    assert out.shape == (batch, 1, 28, 28), out.shape
    # 1e-2 tolerance covers the bf16 output rounding (<= ~4e-3) on top of the shared
    # bf16-operand matmul recipe.
    assert jnp.allclose(out, ref, atol=1e-2, rtol=1e-2), float(jnp.max(jnp.abs(out - ref)))

    print("KERNEL_OK")
</pallas_src>

<mosaic_0001>
module attributes {stable_mosaic.version = 11 : i64} {
  func.func @_generator_kernel(%arg0: i32, %arg1: memref<16x128xbf16, #tpu.memory_space<vmem>>, %arg2: memref<128x256xbf16, #tpu.memory_space<vmem>>, %arg3: memref<1x256xf32, #tpu.memory_space<vmem>>, %arg4: memref<256x512xbf16, #tpu.memory_space<vmem>>, %arg5: memref<1x512xf32, #tpu.memory_space<vmem>>, %arg6: memref<512x896xbf16, #tpu.memory_space<vmem>>, %arg7: memref<1x896xf32, #tpu.memory_space<vmem>>, %arg8: memref<16x896xbf16, #tpu.memory_space<vmem>>) attributes {dimension_semantics = [#tpu.dimension_semantics<parallel>], iteration_bounds = array<i64: 1>, scalar_prefetch = 0 : i64, scratch_operands = 0 : i64, tpu.core_type = #tpu.core_type<tc>, window_params = [{transform_indices = @transform_0, window_bounds = array<i64: 16, 128>}, {pipeline_mode = #tpu.pipeline_mode<synchronous>, transform_indices = @transform_1, window_bounds = array<i64: 128, 256>}, {pipeline_mode = #tpu.pipeline_mode<synchronous>, transform_indices = @transform_2, window_bounds = array<i64: 1, 256>}, {pipeline_mode = #tpu.pipeline_mode<synchronous>, transform_indices = @transform_3, window_bounds = array<i64: 256, 512>}, {pipeline_mode = #tpu.pipeline_mode<synchronous>, transform_indices = @transform_4, window_bounds = array<i64: 1, 512>}, {pipeline_mode = #tpu.pipeline_mode<synchronous>, transform_indices = @transform_5, window_bounds = array<i64: 512, 896>}, {pipeline_mode = #tpu.pipeline_mode<synchronous>, transform_indices = @transform_6, window_bounds = array<i64: 1, 896>}, {transform_indices = @transform_7, window_bounds = array<i64: 16, 896>}]} {
    %c0 = arith.constant 0 : index
    %c0_0 = arith.constant 0 : index
    %0 = vector.load %arg1[%c0, %c0_0] : memref<16x128xbf16, #tpu.memory_space<vmem>>, vector<16x128xbf16>
    %c0_1 = arith.constant 0 : index
    %c0_2 = arith.constant 0 : index
    %1 = vector.load %arg2[%c0_1, %c0_2] : memref<128x256xbf16, #tpu.memory_space<vmem>>, vector<128x256xbf16>
    %cst = arith.constant dense<0.000000e+00> : vector<16x256xf32>
    %2 = tpu.matmul %0, %1, %cst {dimension_numbers = #tpu.dot_dimension_numbers<[1], [0], [0], [1], [0, 0, 1, 1], [], []>} : vector<16x128xbf16>, vector<128x256xbf16>, vector<16x256xf32> -> vector<16x256xf32>
    %c0_3 = arith.constant 0 : index
    %c0_4 = arith.constant 0 : index
    %3 = vector.load %arg3[%c0_3, %c0_4] : memref<1x256xf32, #tpu.memory_space<vmem>>, vector<1x256xf32>
    %4 = vector.broadcast %3 : vector<1x256xf32> to vector<16x256xf32>
    %5 = arith.addf %2, %4 : vector<16x256xf32>
    %cst_5 = arith.constant 0.000000e+00 : f32
    %6 = vector.broadcast %cst_5 : f32 to vector<16x256xf32>
    %7 = arith.maximumf %5, %6 : vector<16x256xf32>
    %8 = arith.truncf %7 : vector<16x256xf32> to vector<16x256xbf16>
    %c0_6 = arith.constant 0 : index
    %c0_7 = arith.constant 0 : index
    %9 = vector.load %arg4[%c0_6, %c0_7] : memref<256x512xbf16, #tpu.memory_space<vmem>>, vector<256x512xbf16>
    %cst_8 = arith.constant dense<0.000000e+00> : vector<16x512xf32>
    %10 = tpu.matmul %8, %9, %cst_8 {dimension_numbers = #tpu.dot_dimension_numbers<[1], [0], [0], [1], [0, 0, 1, 1], [], []>} : vector<16x256xbf16>, vector<256x512xbf16>, vector<16x512xf32> -> vector<16x512xf32>
    %c0_9 = arith.constant 0 : index
    %c0_10 = arith.constant 0 : index
    %11 = vector.load %arg5[%c0_9, %c0_10] : memref<1x512xf32, #tpu.memory_space<vmem>>, vector<1x512xf32>
    %12 = vector.broadcast %11 : vector<1x512xf32> to vector<16x512xf32>
    %13 = arith.addf %10, %12 : vector<16x512xf32>
    %cst_11 = arith.constant 0.000000e+00 : f32
    %14 = vector.broadcast %cst_11 : f32 to vector<16x512xf32>
    %15 = arith.maximumf %13, %14 : vector<16x512xf32>
    %16 = arith.truncf %15 : vector<16x512xf32> to vector<16x512xbf16>
    %c0_12 = arith.constant 0 : index
    %c0_13 = arith.constant 0 : index
    %17 = vector.load %arg6[%c0_12, %c0_13] : memref<512x896xbf16, #tpu.memory_space<vmem>>, vector<512x896xbf16>
    %cst_14 = arith.constant dense<0.000000e+00> : vector<16x896xf32>
    %18 = tpu.matmul %16, %17, %cst_14 {dimension_numbers = #tpu.dot_dimension_numbers<[1], [0], [0], [1], [0, 0, 1, 1], [], []>} : vector<16x512xbf16>, vector<512x896xbf16>, vector<16x896xf32> -> vector<16x896xf32>
    %c0_15 = arith.constant 0 : index
    %c0_16 = arith.constant 0 : index
    %19 = vector.load %arg7[%c0_15, %c0_16] : memref<1x896xf32, #tpu.memory_space<vmem>>, vector<1x896xf32>
    %20 = vector.broadcast %19 : vector<1x896xf32> to vector<16x896xf32>
    %21 = arith.addf %18, %20 : vector<16x896xf32>
    %22 = math.tanh %21 : vector<16x896xf32>
    %23 = arith.truncf %22 : vector<16x896xf32> to vector<16x896xbf16>
    %c0_17 = arith.constant 0 : index
    %c0_18 = arith.constant 0 : index
    %24 = vector.load %arg8[%c0_17, %c0_18] : memref<16x896xbf16, #tpu.memory_space<vmem>>, vector<16x896xbf16>
    tpu.vector_store %arg8[%c0_17, %c0_18], %23 {strides = array<i32>} : memref<16x896xbf16, #tpu.memory_space<vmem>>, vector<16x896xbf16>,
    return
  }
  func.func @transform_0(%arg0: i32) -> (i32, i32) {
    %c0_i32 = arith.constant 0 : i32
    %c0_i32_0 = arith.constant 0 : i32
    return %arg0, %c0_i32 : i32, i32
  }
  func.func @transform_1(%arg0: i32) -> (i32, i32) {
    %c0_i32 = arith.constant 0 : i32
    %c0_i32_0 = arith.constant 0 : i32
    %c0_i32_1 = arith.constant 0 : i32
    return %c0_i32, %c0_i32_0 : i32, i32
  }
  func.func @transform_2(%arg0: i32) -> (i32, i32) {
    %c0_i32 = arith.constant 0 : i32
    %c0_i32_0 = arith.constant 0 : i32
    %c0_i32_1 = arith.constant 0 : i32
    return %c0_i32, %c0_i32_0 : i32, i32
  }
  func.func @transform_3(%arg0: i32) -> (i32, i32) {
    %c0_i32 = arith.constant 0 : i32
    %c0_i32_0 = arith.constant 0 : i32
    %c0_i32_1 = arith.constant 0 : i32
    return %c0_i32, %c0_i32_0 : i32, i32
  }
  func.func @transform_4(%arg0: i32) -> (i32, i32) {
    %c0_i32 = arith.constant 0 : i32
    %c0_i32_0 = arith.constant 0 : i32
    %c0_i32_1 = arith.constant 0 : i32
    return %c0_i32, %c0_i32_0 : i32, i32
  }
  func.func @transform_5(%arg0: i32) -> (i32, i32) {
    %c0_i32 = arith.constant 0 : i32
    %c0_i32_0 = arith.constant 0 : i32
    %c0_i32_1 = arith.constant 0 : i32
    return %c0_i32, %c0_i32_0 : i32, i32
  }
  func.func @transform_6(%arg0: i32) -> (i32, i32) {
    %c0_i32 = arith.constant 0 : i32
    %c0_i32_0 = arith.constant 0 : i32
    %c0_i32_1 = arith.constant 0 : i32
    return %c0_i32, %c0_i32_0 : i32, i32
  }
  func.func @transform_7(%arg0: i32) -> (i32, i32) {
    %c0_i32 = arith.constant 0 : i32
    %c0_i32_0 = arith.constant 0 : i32
    return %arg0, %c0_i32 : i32, i32
  }
}

</mosaic_0001>

<llo_original>
// kernel: generator_forward.1
$region0: #{generator_forward.1}
  #allocation0 [shape = 'u32[]', space=smem, size = 0x4, offset = 0x4, fixed_abs, tag = 'smem constant byte address 0x4 - core index']
  #allocation1 [shape = 'u32[144,128]{1,0:T(1,128)}', space=vmem, size = 0x12000, scoped, tag = 'internal scratch']
  %s0 = inlined_call_operand.vmem [shape: bf16[16,128], index: 0, kind: input, shape index: {}]
  %s1 = inlined_call_operand.hbm [shape: bf16[128,256], index: 1, kind: input, shape index: {}]
  %s2 = inlined_call_operand.vmem [shape: f32[1,256], index: 2, kind: input, shape index: {}]
  %s3 = inlined_call_operand.hbm [shape: bf16[256,512], index: 3, kind: input, shape index: {}]
  %s4 = inlined_call_operand.vmem [shape: f32[1,512], index: 4, kind: input, shape index: {}]
  %s5 = inlined_call_operand.hbm [shape: bf16[512,896], index: 5, kind: input, shape index: {}]
  %s6 = inlined_call_operand.vmem [shape: f32[1,896], index: 6, kind: input, shape index: {}]
  %s7 = inlined_call_operand.vmem [shape: bf16[16,896], index: 7, kind: output, shape index: {}]
  %s8 = sld [smem:[#allocation0]]
  $region50: #{generator_forward.1} parent=0
    _
  %s10 = ssub.s32 1, %s8
  %s11 = scalar_select 0, %s10, %s8
  $region1: #{generator_forward.1} parent=0
    #allocation2 [shape = 'u8[65536]{0}', space=vmem, size = 0x10000, scoped, tag = 'input window, operand 1, single buffered']
    #allocation3 [shape = 's32[1]{0}', space=sflag, size = 0x4, scoped, tag = 'scoped memory for generator_forward.1']
    #allocation4 [shape = 'u8[262144]{0}', space=vmem, size = 0x40000, scoped, tag = 'input window, operand 3, single buffered']
    #allocation5 [shape = 's32[1]{0}', space=sflag, size = 0x4, scoped, tag = 'scoped memory for generator_forward.1']
    #allocation6 [shape = 'u8[917504]{0}', space=vmem, size = 0xe0000, scoped, tag = 'input window, operand 5, single buffered']
    %12 = vsyncpa [#allocation3], 0
    %13 = vsyncpa [#allocation5], 0
    // Predicated region
    $region2: #{generator_forward.1} parent=1 // pred_check
      _
    $region3: #{generator_forward.1} parent=1 // pred_check_branch
      %15 = sbr.rel (0) target = $region5
    $region4: #{generator_forward.1} parent=1 // pred_region
      _
    $region5: #{generator_forward.1} parent=1 // pred_fallthru
      _
    // Predicated region
    $region6: #{generator_forward.1} parent=1 // pred_check
      _
    $region7: #{generator_forward.1} parent=1 // pred_check_branch
      %17 = sbr.rel (0) target = $region9
    $region8: #{generator_forward.1} parent=1 // pred_region
      %s19 = ssub.s32 2048, 2048
      %20 = vsyncadd [#allocation3], %s19
      %s21 = sshll.u32 [#allocation2], 4
      %s22 = int_to_ptr.vmem [resolvable:$true] %s21
      %27 = dma.hbm_to_vmem [thread:$0]  %s1, 2048, %s22, [#allocation3], 128, 128, 8
    $region9: #{generator_forward.1} parent=1 // pred_fallthru
      _
    // Predicated region
    $region10: #{generator_forward.1} parent=1 // pred_check
      _
    $region11: #{generator_forward.1} parent=1 // pred_check_branch
      %29 = sbr.rel (0) target = $region13
    $region12: #{generator_forward.1} parent=1 // pred_region
      _
    $region13: #{generator_forward.1} parent=1 // pred_fallthru
      _
    // Predicated region
    $region14: #{generator_forward.1} parent=1 // pred_check
      _
    $region15: #{generator_forward.1} parent=1 // pred_check_branch
      %31 = sbr.rel (0) target = $region17
    $region16: #{generator_forward.1} parent=1 // pred_region
      %s33 = ssub.s32 8192, 8192
      %34 = vsyncadd [#allocation5], %s33
      %s35 = sshll.u32 [#allocation4], 4
      %s36 = int_to_ptr.vmem [resolvable:$true] %s35
      %41 = dma.hbm_to_vmem [thread:$0]  %s3, 8192, %s36, [#allocation5], 256, 256, 16
    $region17: #{generator_forward.1} parent=1 // pred_fallthru
      _
    // Predicated region
    $region18: #{generator_forward.1} parent=1 // pred_check
      _
    $region19: #{generator_forward.1} parent=1 // pred_check_branch
      %43 = sbr.rel (0) target = $region21
    $region20: #{generator_forward.1} parent=1 // pred_region
      _
    $region21: #{generator_forward.1} parent=1 // pred_fallthru
      _
    // Predicated region
    $region22: #{generator_forward.1} parent=1 // pred_check
      _
    $region23: #{generator_forward.1} parent=1 // pred_check_branch
      %45 = sbr.rel (0) target = $region25
    $region24: #{generator_forward.1} parent=1 // pred_region
      %s47 = ssub.s32 28672, 28672
      %48 = vsyncadd [#allocation5], %s47
      %s49 = sshll.u32 [#allocation6], 4
      %s50 = int_to_ptr.vmem [resolvable:$true] %s49
      %55 = dma.hbm_to_vmem [thread:$0]  %s5, 28672, %s50, [#allocation5], 448, 448, 28
    $region25: #{generator_forward.1} parent=1 // pred_fallthru
      _
    // Predicated region
    $region26: #{generator_forward.1} parent=1 // pred_check
      _
    $region27: #{generator_forward.1} parent=1 // pred_check_branch
      %57 = sbr.rel (0) target = $region29
    $region28: #{generator_forward.1} parent=1 // pred_region
      _
    $region29: #{generator_forward.1} parent=1 // pred_fallthru
      _
    // Predicated region
    $region30: #{generator_forward.1} parent=1 // pred_check
      _
    $region31: #{generator_forward.1} parent=1 // pred_check_branch
      %59 = sbr.rel (0) target = $region33
    $region32: #{generator_forward.1} parent=1 // pred_region
      %60 = dma.done [#allocation3], 2048
    $region33: #{generator_forward.1} parent=1 // pred_fallthru
      _
    // Predicated region
    $region34: #{generator_forward.1} parent=1 // pred_check
      _
    $region35: #{generator_forward.1} parent=1 // pred_check_branch
      %62 = sbr.rel (0) target = $region37
    $region36: #{generator_forward.1} parent=1 // pred_region
      %63 = dma.done [#allocation5], 8192
    $region37: #{generator_forward.1} parent=1 // pred_fallthru
      _
    // Predicated region
    $region38: #{generator_forward.1} parent=1 // pred_check
      _
    $region39: #{generator_forward.1} parent=1 // pred_check_branch
      %65 = sbr.rel (0) target = $region41
    $region40: #{generator_forward.1} parent=1 // pred_region
      %66 = dma.done [#allocation5], 28672
    $region41: #{generator_forward.1} parent=1 // pred_fallthru
      _
    %v68 = vld [vmem:[%s0] sm:$0xf]
    %v69 = vld [vmem:[%s0 + $0x4] sm:$0xf]
    %v70 = vld [vmem:[#allocation2] sm:$0xff]
    %v71 = vld [vmem:[#allocation2 + $0x8] sm:$0xff]
    %v72 = vld [vmem:[#allocation2 + $0x10] sm:$0xff]
    %v73 = vld [vmem:[#allocation2 + $0x18] sm:$0xff]
    %v74 = vld [vmem:[#allocation2 + $0x20] sm:$0xff]
    %v75 = vld [vmem:[#allocation2 + $0x28] sm:$0xff]
    %v76 = vld [vmem:[#allocation2 + $0x30] sm:$0xff]
    %v77 = vld [vmem:[#allocation2 + $0x38] sm:$0xff]
    %v78 = vld [vmem:[#allocation2 + $0x40] sm:$0xff]
    %v79 = vld [vmem:[#allocation2 + $0x48] sm:$0xff]
    %v80 = vld [vmem:[#allocation2 + $0x50] sm:$0xff]
    %v81 = vld [vmem:[#allocation2 + $0x58] sm:$0xff]
    %v82 = vld [vmem:[#allocation2 + $0x60] sm:$0xff]
    %v83 = vld [vmem:[#allocation2 + $0x68] sm:$0xff]
    %v84 = vld [vmem:[#allocation2 + $0x70] sm:$0xff]
    %v85 = vld [vmem:[#allocation2 + $0x78] sm:$0xff]
    %v86 = vld [vmem:[%s2] sm:$0x3]
    %v88 = vlaneseq
    %v89 = vshrl.u32 %v88, 7
    %v90 = vsub.s32 0, %v89
    %v91 = vrot.slane %v86, %v90
    %v92 = vlaneseq
    %v93 = vshrl.u32 %v92, 7
    %v94 = vsub.s32 1, %v93
    %v95 = vrot.slane %v86, %v94
    %v100 = vunpack.c.l.b16 %v68
    %v101 = vunpack.c.l.b16 %v69
    %v102 = vpack.c.b16 %v101, %v100
    %v120 = vunpack.c.l.b16 %v70
    %v121 = vunpack.c.h.b16 %v70
    %v122 = vunpack.c.l.b16 %v71
    %v123 = vunpack.c.h.b16 %v71
    %v124 = vunpack.c.l.b16 %v72
    %v125 = vunpack.c.h.b16 %v72
    %v126 = vunpack.c.l.b16 %v73
    %v127 = vunpack.c.h.b16 %v73
    %v128 = vunpack.c.l.b16 %v74
    %v129 = vunpack.c.h.b16 %v74
    %v130 = vunpack.c.l.b16 %v75
    %v131 = vunpack.c.h.b16 %v75
    %v132 = vunpack.c.l.b16 %v76
    %v133 = vunpack.c.h.b16 %v76
    %v134 = vunpack.c.l.b16 %v77
    %v135 = vunpack.c.h.b16 %v77
    %v136 = vunpack.c.l.b16 %v78
    %v137 = vunpack.c.h.b16 %v78
    %v138 = vunpack.c.l.b16 %v79
    %v139 = vunpack.c.h.b16 %v79
    %v140 = vunpack.c.l.b16 %v80
    %v141 = vunpack.c.h.b16 %v80
    %v142 = vunpack.c.l.b16 %v81
    %v143 = vunpack.c.h.b16 %v81
    %v144 = vunpack.c.l.b16 %v82
    %v145 = vunpack.c.h.b16 %v82
    %v146 = vunpack.c.l.b16 %v83
    %v147 = vunpack.c.h.b16 %v83
    %v148 = vunpack.c.l.b16 %v84
    %v149 = vunpack.c.h.b16 %v84
    %v150 = vunpack.c.l.b16 %v85
    %v151 = vunpack.c.h.b16 %v85
    %v152 = vpack.c.b16 %v122, %v120
    %v153 = vpack.c.b16 %v123, %v121
    %v154 = vpack.c.b16 %v126, %v124
    %v155 = vpack.c.b16 %v127, %v125
    %v156 = vpack.c.b16 %v130, %v128
    %v157 = vpack.c.b16 %v131, %v129
    %v158 = vpack.c.b16 %v134, %v132
    %v159 = vpack.c.b16 %v135, %v133
    %v160 = vpack.c.b16 %v138, %v136
    %v161 = vpack.c.b16 %v139, %v137
    %v162 = vpack.c.b16 %v142, %v140
    %v163 = vpack.c.b16 %v143, %v141
    %v164 = vpack.c.b16 %v146, %v144
    %v165 = vpack.c.b16 %v147, %v145
    %v166 = vpack.c.b16 %v150, %v148
    %v167 = vpack.c.b16 %v151, %v149
    %184 = vmatprep.subr.bf16.mxu0 %v167
    %185 = vmatpush1.bf16.msra.mxu0 %v166
    %186 = vmatprep.subr.bf16.mxu0 %v165
    %187 = vmatpush1.bf16.msra.mxu0 %v164
    %188 = vmatprep.subr.bf16.mxu0 %v163
    %189 = vmatpush1.bf16.msra.mxu0 %v162
    %190 = vmatprep.subr.bf16.mxu0 %v161
    %191 = vmatpush1.bf16.msra.mxu0 %v160
    %192 = vmatprep.subr.bf16.mxu0 %v159
    %193 = vmatpush1.bf16.msra.mxu0 %v158
    %194 = vmatprep.subr.bf16.mxu0 %v157
    %195 = vmatpush1.bf16.msra.mxu0 %v156
    %196 = vmatprep.subr.bf16.mxu0 %v155
    %197 = vmatpush1.bf16.msra.mxu0 %v154
    %198 = vmatprep.subr.bf16.mxu0 %v153
    %199 = vmatpush1.bf16.msra.mxu0 %v152
    %200 = vmatprep.subr.bf16.mxu0 0
    %201 = vmatpush2.bf16.msra.mxu0 0
    %202 = vmatprep.subr.bf16.mxu0 0
    %203 = vmatpush2.bf16.msra.mxu0 0
    %204 = vmatprep.subr.bf16.mxu0 0
    %205 = vmatpush2.bf16.msra.mxu0 0
    %206 = vmatprep.subr.bf16.mxu0 0
    %207 = vmatpush2.bf16.msra.mxu0 0
    %208 = vmatprep.subr.bf16.mxu0 0
    %209 = vmatpush2.bf16.msra.mxu0 0
    %210 = vmatprep.subr.bf16.mxu0 0
    %211 = vmatpush2.bf16.msra.mxu0 0
    %212 = vmatprep.subr.bf16.mxu0 0
    %213 = vmatpush2.bf16.msra.mxu0 0
    %214 = vmatprep.subr.bf16.mxu0 0
    %215 = vmatpush2.bf16.msra.mxu0 0
    %216 = vmatprep.mubr.bf16.mxu0 0
    %217 = vmatmul.mubr.bf16.gmra.mxu0 %v102
    %v218 = vpop.f32.mrf.mxu0
    %v219 = vadd.f32 %v91, %v218
    %v220 = vpop.f32.mrf.mxu0
    %v221 = vadd.f32 %v95, %v220
    %v222 = vpop.f32.mrf.mxu0
    %v223 = vadd.f32 %v91, %v222
    %v224 = vpop.f32.mrf.mxu0
    %v225 = vadd.f32 %v95, %v224
    %226 = vdwg.mxu0
    %v227 = vmax.f32 %v219, 0.0
    %v228 = vmax.f32 %v221, 0.0
    %v229 = vmax.f32 %v223, 0.0
    %v230 = vmax.f32 %v225, 0.0
    %v231 = vpack.c.bf16 %v229, %v227
    %v232 = vpack.c.bf16 %v230, %v228
    %v233 = vld [vmem:[#allocation4] sm:$0xff]
    %v234 = vld [vmem:[#allocation4 + $0x8] sm:$0xff]
    %v235 = vld [vmem:[#allocation4 + $0x10] sm:$0xff]
    %v236 = vld [vmem:[#allocation4 + $0x18] sm:$0xff]
    %v237 = vld [vmem:[#allocation4 + $0x20] sm:$0xff]
    %v238 = vld [vmem:[#allocation4 + $0x28] sm:$0xff]
    %v239 = vld [vmem:[#allocation4 + $0x30] sm:$0xff]
    %v240 = vld [vmem:[#allocation4 + $0x38] sm:$0xff]
    %v241 = vld [vmem:[#allocation4 + $0x40] sm:$0xff]
    %v242 = vld [vmem:[#allocation4 + $0x48] sm:$0xff]
    %v243 = vld [vmem:[#allocation4 + $0x50] sm:$0xff]
    %v244 = vld [vmem:[#allocation4 + $0x58] sm:$0xff]
    %v245 = vld [vmem:[#allocation4 + $0x60] sm:$0xff]
    %v246 = vld [vmem:[#allocation4 + $0x68] sm:$0xff]
    %v247 = vld [vmem:[#allocation4 + $0x70] sm:$0xff]
    %v248 = vld [vmem:[#allocation4 + $0x78] sm:$0xff]
    %v249 = vld [vmem:[#allocation4 + $0x80] sm:$0xff]
    %v250 = vld [vmem:[#allocation4 + $0x88] sm:$0xff]
    %v251 = vld [vmem:[#allocation4 + $0x90] sm:$0xff]
    %v252 = vld [vmem:[#allocation4 + $0x98] sm:$0xff]
    %v253 = vld [vmem:[#allocation4 + $0xa0] sm:$0xff]
    %v254 = vld [vmem:[#allocation4 + $0xa8] sm:$0xff]
    %v255 = vld [vmem:[#allocation4 + $0xb0] sm:$0xff]
    %v256 = vld [vmem:[#allocation4 + $0xb8] sm:$0xff]
    %v257 = vld [vmem:[#allocation4 + $0xc0] sm:$0xff]
    %v258 = vld [vmem:[#allocation4 + $0xc8] sm:$0xff]
    %v259 = vld [vmem:[#allocation4 + $0xd0] sm:$0xff]
    %v260 = vld [vmem:[#allocation4 + $0xd8] sm:$0xff]
    %v261 = vld [vmem:[#allocation4 + $0xe0] sm:$0xff]
    %v262 = vld [vmem:[#allocation4 + $0xe8] sm:$0xff]
    %v263 = vld [vmem:[#allocation4 + $0xf0] sm:$0xff]
    %v264 = vld [vmem:[#allocation4 + $0xf8] sm:$0xff]
    %v265 = vld [vmem:[#allocation4 + $0x100] sm:$0xff]
    %v266 = vld [vmem:[#allocation4 + $0x108] sm:$0xff]
    %v267 = vld [vmem:[#allocation4 + $0x110] sm:$0xff]
    %v268 = vld [vmem:[#allocation4 + $0x118] sm:$0xff]
    %v269 = vld [vmem:[#allocation4 + $0x120] sm:$0xff]
    %v270 = vld [vmem:[#allocation4 + $0x128] sm:$0xff]
    %v271 = vld [vmem:[#allocation4 + $0x130] sm:$0xff]
    %v272 = vld [vmem:[#allocation4 + $0x138] sm:$0xff]
    %v273 = vld [vmem:[#allocation4 + $0x140] sm:$0xff]
    %v274 = vld [vmem:[#allocation4 + $0x148] sm:$0xff]
    %v275 = vld [vmem:[#allocation4 + $0x150] sm:$0xff]
    %v276 = vld [vmem:[#allocation4 + $0x158] sm:$0xff]
    %v277 = vld [vmem:[#allocation4 + $0x160] sm:$0xff]
    %v278 = vld [vmem:[#allocation4 + $0x168] sm:$0xff]
    %v279 = vld [vmem:[#allocation4 + $0x170] sm:$0xff]
    %v280 = vld [vmem:[#allocation4 + $0x178] sm:$0xff]
    %v281 = vld [vmem:[#allocation4 + $0x180] sm:$0xff]
    %v282 = vld [vmem:[#allocation4 + $0x188] sm:$0xff]
    %v283 = vld [vmem:[#allocation4 + $0x190] sm:$0xff]
    %v284 = vld [vmem:[#allocation4 + $0x198] sm:$0xff]
    %v285 = vld [vmem:[#allocation4 + $0x1a0] sm:$0xff]
    %v286 = vld [vmem:[#allocation4 + $0x1a8] sm:$0xff]
    %v287 = vld [vmem:[#allocation4 + $0x1b0] sm:$0xff]
    %v288 = vld [vmem:[#allocation4 + $0x1b8] sm:$0xff]
    %v289 = vld [vmem:[#allocation4 + $0x1c0] sm:$0xff]
    %v290 = vld [vmem:[#allocation4 + $0x1c8] sm:$0xff]
    %v291 = vld [vmem:[#allocation4 + $0x1d0] sm:$0xff]
    %v292 = vld [vmem:[#allocation4 + $0x1d8] sm:$0xff]
    %v293 = vld [vmem:[#allocation4 + $0x1e0] sm:$0xff]
    %v294 = vld [vmem:[#allocation4 + $0x1e8] sm:$0xff]
    %v295 = vld [vmem:[#allocation4 + $0x1f0] sm:$0xff]
    %v296 = vld [vmem:[#allocation4 + $0x1f8] sm:$0xff]
    %v297 = vld [vmem:[%s4] sm:$0xf]
    %v299 = vlaneseq
    %v300 = vshrl.u32 %v299, 7
    %v301 = vsub.s32 0, %v300
    %v302 = vrot.slane %v297, %v301
    %v303 = vlaneseq
    %v304 = vshrl.u32 %v303, 7
    %v305 = vsub.s32 1, %v304
    %v306 = vrot.slane %v297, %v305
    %v307 = vlaneseq
    %v308 = vshrl.u32 %v307, 7
    %v309 = vsub.s32 2, %v308
    %v310 = vrot.slane %v297, %v309
    %v311 = vlaneseq
    %v312 = vshrl.u32 %v311, 7
    %v313 = vsub.s32 3, %v312
    %v314 = vrot.slane %v297, %v313
    %v383 = vunpack.c.l.b16 %v233
    %v384 = vunpack.c.h.b16 %v233
    %v385 = vunpack.c.l.b16 %v234
    %v386 = vunpack.c.h.b16 %v234
    %v387 = vunpack.c.l.b16 %v235
    %v388 = vunpack.c.h.b16 %v235
    %v389 = vunpack.c.l.b16 %v236
    %v390 = vunpack.c.h.b16 %v236
    %v391 = vunpack.c.l.b16 %v237
    %v392 = vunpack.c.h.b16 %v237
    %v393 = vunpack.c.l.b16 %v238
    %v394 = vunpack.c.h.b16 %v238
    %v395 = vunpack.c.l.b16 %v239
    %v396 = vunpack.c.h.b16 %v239
    %v397 = vunpack.c.l.b16 %v240
    %v398 = vunpack.c.h.b16 %v240
    %v399 = vunpack.c.l.b16 %v241
    %v400 = vunpack.c.h.b16 %v241
    %v401 = vunpack.c.l.b16 %v242
    %v402 = vunpack.c.h.b16 %v242
    %v403 = vunpack.c.l.b16 %v243
    %v404 = vunpack.c.h.b16 %v243
    %v405 = vunpack.c.l.b16 %v244
    %v406 = vunpack.c.h.b16 %v244
    %v407 = vunpack.c.l.b16 %v245
    %v408 = vunpack.c.h.b16 %v245
    %v409 = vunpack.c.l.b16 %v246
    %v410 = vunpack.c.h.b16 %v246
    %v411 = vunpack.c.l.b16 %v247
    %v412 = vunpack.c.h.b16 %v247
    %v413 = vunpack.c.l.b16 %v248
    %v414 = vunpack.c.h.b16 %v248
    %v415 = vunpack.c.l.b16 %v249
    %v416 = vunpack.c.h.b16 %v249
    %v417 = vunpack.c.l.b16 %v250
    %v418 = vunpack.c.h.b16 %v250
    %v419 = vunpack.c.l.b16 %v251
    %v420 = vunpack.c.h.b16 %v251
    %v421 = vunpack.c.l.b16 %v252
    %v422 = vunpack.c.h.b16 %v252
    %v423 = vunpack.c.l.b16 %v253
    %v424 = vunpack.c.h.b16 %v253
    %v425 = vunpack.c.l.b16 %v254
    %v426 = vunpack.c.h.b16 %v254
    %v427 = vunpack.c.l.b16 %v255
    %v428 = vunpack.c.h.b16 %v255
    %v429 = vunpack.c.l.b16 %v256
    %v430 = vunpack.c.h.b16 %v256
    %v431 = vunpack.c.l.b16 %v257
    %v432 = vunpack.c.h.b16 %v257
    %v433 = vunpack.c.l.b16 %v258
    %v434 = vunpack.c.h.b16 %v258
    %v435 = vunpack.c.l.b16 %v259
    %v436 = vunpack.c.h.b16 %v259
    %v437 = vunpack.c.l.b16 %v260
    %v438 = vunpack.c.h.b16 %v260
    %v439 = vunpack.c.l.b16 %v261
    %v440 = vunpack.c.h.b16 %v261
    %v441 = vunpack.c.l.b16 %v262
    %v442 = vunpack.c.h.b16 %v262
    %v443 = vunpack.c.l.b16 %v263
    %v444 = vunpack.c.h.b16 %v263
    %v445 = vunpack.c.l.b16 %v264
    %v446 = vunpack.c.h.b16 %v264
    %v447 = vunpack.c.l.b16 %v265
    %v448 = vunpack.c.h.b16 %v265
    %v449 = vunpack.c.l.b16 %v266
    %v450 = vunpack.c.h.b16 %v266
    %v451 = vunpack.c.l.b16 %v267
    %v452 = vunpack.c.h.b16 %v267
    %v453 = vunpack.c.l.b16 %v268
    %v454 = vunpack.c.h.b16 %v268
    %v455 = vunpack.c.l.b16 %v269
    %v456 = vunpack.c.h.b16 %v269
    %v457 = vunpack.c.l.b16 %v270
    %v458 = vunpack.c.h.b16 %v270
    %v459 = vunpack.c.l.b16 %v271
    %v460 = vunpack.c.h.b16 %v271
    %v461 = vunpack.c.l.b16 %v272
    %v462 = vunpack.c.h.b16 %v272
    %v463 = vunpack.c.l.b16 %v273
    %v464 = vunpack.c.h.b16 %v273
    %v465 = vunpack.c.l.b16 %v274
    %v466 = vunpack.c.h.b16 %v274
    %v467 = vunpack.c.l.b16 %v275
    %v468 = vunpack.c.h.b16 %v275
    %v469 = vunpack.c.l.b16 %v276
    %v470 = vunpack.c.h.b16 %v276
    %v471 = vunpack.c.l.b16 %v277
    %v472 = vunpack.c.h.b16 %v277
    %v473 = vunpack.c.l.b16 %v278
    %v474 = vunpack.c.h.b16 %v278
    %v475 = vunpack.c.l.b16 %v279
    %v476 = vunpack.c.h.b16 %v279
    %v477 = vunpack.c.l.b16 %v280
    %v478 = vunpack.c.h.b16 %v280
    %v479 = vunpack.c.l.b16 %v281
    %v480 = vunpack.c.h.b16 %v281
    %v481 = vunpack.c.l.b16 %v282
    %v482 = vunpack.c.h.b16 %v282
    %v483 = vunpack.c.l.b16 %v283
    %v484 = vunpack.c.h.b16 %v283
    %v485 = vunpack.c.l.b16 %v284
    %v486 = vunpack.c.h.b16 %v284
    %v487 = vunpack.c.l.b16 %v285
    %v488 = vunpack.c.h.b16 %v285
    %v489 = vunpack.c.l.b16 %v286
    %v490 = vunpack.c.h.b16 %v286
    %v491 = vunpack.c.l.b16 %v287
    %v492 = vunpack.c.h.b16 %v287
    %v493 = vunpack.c.l.b16 %v288
    %v494 = vunpack.c.h.b16 %v288
    %v495 = vunpack.c.l.b16 %v289
    %v496 = vunpack.c.h.b16 %v289
    %v497 = vunpack.c.l.b16 %v290
    %v498 = vunpack.c.h.b16 %v290
    %v499 = vunpack.c.l.b16 %v291
    %v500 = vunpack.c.h.b16 %v291
    %v501 = vunpack.c.l.b16 %v292
    %v502 = vunpack.c.h.b16 %v292
    %v503 = vunpack.c.l.b16 %v293
    %v504 = vunpack.c.h.b16 %v293
    %v505 = vunpack.c.l.b16 %v294
    %v506 = vunpack.c.h.b16 %v294
    %v507 = vunpack.c.l.b16 %v295
    %v508 = vunpack.c.h.b16 %v295
    %v509 = vunpack.c.l.b16 %v296
    %v510 = vunpack.c.h.b16 %v296
    %v511 = vpack.c.b16 %v387, %v383
    %v512 = vpack.c.b16 %v388, %v384
    %v513 = vpack.c.b16 %v389, %v385
    %v514 = vpack.c.b16 %v390, %v386
    %v515 = vpack.c.b16 %v395, %v391
    %v516 = vpack.c.b16 %v396, %v392
    %v517 = vpack.c.b16 %v397, %v393
    %v518 = vpack.c.b16 %v398, %v394
    %v519 = vpack.c.b16 %v403, %v399
    %v520 = vpack.c.b16 %v404, %v400
    %v521 = vpack.c.b16 %v405, %v401
    %v522 = vpack.c.b16 %v406, %v402
    %v523 = vpack.c.b16 %v411, %v407
    %v524 = vpack.c.b16 %v412, %v408
    %v525 = vpack.c.b16 %v413, %v409
    %v526 = vpack.c.b16 %v414, %v410
    %v527 = vpack.c.b16 %v419, %v415
    %v528 = vpack.c.b16 %v420, %v416
    %v529 = vpack.c.b16 %v421, %v417
    %v530 = vpack.c.b16 %v422, %v418
    %v531 = vpack.c.b16 %v427, %v423
    %v532 = vpack.c.b16 %v428, %v424
    %v533 = vpack.c.b16 %v429, %v425
    %v534 = vpack.c.b16 %v430, %v426
    %v535 = vpack.c.b16 %v435, %v431
    %v536 = vpack.c.b16 %v436, %v432
    %v537 = vpack.c.b16 %v437, %v433
    %v538 = vpack.c.b16 %v438, %v434
    %v539 = vpack.c.b16 %v443, %v439
    %v540 = vpack.c.b16 %v444, %v440
    %v541 = vpack.c.b16 %v445, %v441
    %v542 = vpack.c.b16 %v446, %v442
    %v543 = vpack.c.b16 %v451, %v447
    %v544 = vpack.c.b16 %v452, %v448
    %v545 = vpack.c.b16 %v453, %v449
    %v546 = vpack.c.b16 %v454, %v450
    %v547 = vpack.c.b16 %v459, %v455
    %v548 = vpack.c.b16 %v460, %v456
    %v549 = vpack.c.b16 %v461, %v457
    %v550 = vpack.c.b16 %v462, %v458
    %v551 = vpack.c.b16 %v467, %v463
    %v552 = vpack.c.b16 %v468, %v464
    %v553 = vpack.c.b16 %v469, %v465
    %v554 = vpack.c.b16 %v470, %v466
    %v555 = vpack.c.b16 %v475, %v471
    %v556 = vpack.c.b16 %v476, %v472
    %v557 = vpack.c.b16 %v477, %v473
    %v558 = vpack.c.b16 %v478, %v474
    %v559 = vpack.c.b16 %v483, %v479
    %v560 = vpack.c.b16 %v484, %v480
    %v561 = vpack.c.b16 %v485, %v481
    %v562 = vpack.c.b16 %v486, %v482
    %v563 = vpack.c.b16 %v491, %v487
    %v564 = vpack.c.b16 %v492, %v488
    %v565 = vpack.c.b16 %v493, %v489
    %v566 = vpack.c.b16 %v494, %v490
    %v567 = vpack.c.b16 %v499, %v495
    %v568 = vpack.c.b16 %v500, %v496
    %v569 = vpack.c.b16 %v501, %v497
    %v570 = vpack.c.b16 %v502, %v498
    %v571 = vpack.c.b16 %v507, %v503
    %v572 = vpack.c.b16 %v508, %v504
    %v573 = vpack.c.b16 %v509, %v505
    %v574 = vpack.c.b16 %v510, %v506
    %639 = vmatprep.subr.bf16.mxu0 %v540
    %640 = vmatpush1.bf16.msra.mxu0 %v539
    %641 = vmatprep.subr.bf16.mxu0 %v536
    %642 = vmatpush1.bf16.msra.mxu0 %v535
    %643 = vmatprep.subr.bf16.mxu0 %v532
    %644 = vmatpush1.bf16.msra.mxu0 %v531
    %645 = vmatprep.subr.bf16.mxu0 %v528
    %646 = vmatpush1.bf16.msra.mxu0 %v527
    %647 = vmatprep.subr.bf16.mxu0 %v524
    %648 = vmatpush1.bf16.msra.mxu0 %v523
    %649 = vmatprep.subr.bf16.mxu0 %v520
    %650 = vmatpush1.bf16.msra.mxu0 %v519
    %651 = vmatprep.subr.bf16.mxu0 %v516
    %652 = vmatpush1.bf16.msra.mxu0 %v515
    %653 = vmatprep.subr.bf16.mxu0 %v512
    %654 = vmatpush1.bf16.msra.mxu0 %v511
    %655 = vmatprep.subr.bf16.mxu0 %v572
    %656 = vmatpush2.bf16.msra.mxu0 %v571
    %657 = vmatprep.subr.bf16.mxu0 %v568
    %658 = vmatpush2.bf16.msra.mxu0 %v567
    %659 = vmatprep.subr.bf16.mxu0 %v564
    %660 = vmatpush2.bf16.msra.mxu0 %v563
    %661 = vmatprep.subr.bf16.mxu0 %v560
    %662 = vmatpush2.bf16.msra.mxu0 %v559
    %663 = vmatprep.subr.bf16.mxu0 %v556
    %664 = vmatpush2.bf16.msra.mxu0 %v555
    %665 = vmatprep.subr.bf16.mxu0 %v552
    %666 = vmatpush2.bf16.msra.mxu0 %v551
    %667 = vmatprep.subr.bf16.mxu0 %v548
    %668 = vmatpush2.bf16.msra.mxu0 %v547
    %669 = vmatprep.subr.bf16.mxu0 %v544
    %670 = vmatpush2.bf16.msra.mxu0 %v543
    %671 = vmatprep.mubr.bf16.mxu0 %v232
    %672 = vmatmul.mubr.bf16.gmra.mxu0 %v231
    %v673 = vpop.f32.mrf.mxu0
    %v674 = vadd.f32 %v302, %v673
    %v675 = vpop.f32.mrf.mxu0
    %v676 = vadd.f32 %v306, %v675
    %v677 = vpop.f32.mrf.mxu0
    %v678 = vadd.f32 %v302, %v677
    %v679 = vpop.f32.mrf.mxu0
    %v680 = vadd.f32 %v306, %v679
    %681 = vdwg.mxu0
    %682 = vmatprep.subr.bf16.mxu0 %v542
    %683 = vmatpush1.bf16.msra.mxu0 %v541
    %684 = vmatprep.subr.bf16.mxu0 %v538
    %685 = vmatpush1.bf16.msra.mxu0 %v537
    %686 = vmatprep.subr.bf16.mxu0 %v534
    %687 = vmatpush1.bf16.msra.mxu0 %v533
    %688 = vmatprep.subr.bf16.mxu0 %v530
    %689 = vmatpush1.bf16.msra.mxu0 %v529
    %690 = vmatprep.subr.bf16.mxu0 %v526
    %691 = vmatpush1.bf16.msra.mxu0 %v525
    %692 = vmatprep.subr.bf16.mxu0 %v522
    %693 = vmatpush1.bf16.msra.mxu0 %v521
    %694 = vmatprep.subr.bf16.mxu0 %v518
    %695 = vmatpush1.bf16.msra.mxu0 %v517
    %696 = vmatprep.subr.bf16.mxu0 %v514
    %697 = vmatpush1.bf16.msra.mxu0 %v513
    %698 = vmatprep.subr.bf16.mxu0 %v574
    %699 = vmatpush2.bf16.msra.mxu0 %v573
    %700 = vmatprep.subr.bf16.mxu0 %v570
    %701 = vmatpush2.bf16.msra.mxu0 %v569
    %702 = vmatprep.subr.bf16.mxu0 %v566
    %703 = vmatpush2.bf16.msra.mxu0 %v565
    %704 = vmatprep.subr.bf16.mxu0 %v562
    %705 = vmatpush2.bf16.msra.mxu0 %v561
    %706 = vmatprep.subr.bf16.mxu0 %v558
    %707 = vmatpush2.bf16.msra.mxu0 %v557
    %708 = vmatprep.subr.bf16.mxu0 %v554
    %709 = vmatpush2.bf16.msra.mxu0 %v553
    %710 = vmatprep.subr.bf16.mxu0 %v550
    %711 = vmatpush2.bf16.msra.mxu0 %v549
    %712 = vmatprep.subr.bf16.mxu0 %v546
    %713 = vmatpush2.bf16.msra.mxu0 %v545
    %714 = vmatprep.mubr.bf16.mxu0 %v232
    %715 = vmatmul.mubr.bf16.gmra.mxu0 %v231
    %v716 = vpop.f32.mrf.mxu0
    %v717 = vadd.f32 %v310, %v716
    %v718 = vpop.f32.mrf.mxu0
    %v719 = vadd.f32 %v314, %v718
    %v720 = vpop.f32.mrf.mxu0
    %v721 = vadd.f32 %v310, %v720
    %v722 = vpop.f32.mrf.mxu0
    %v723 = vadd.f32 %v314, %v722
    %724 = vdwg.mxu0
    %v725 = vmax.f32 %v674, 0.0
    %v726 = vmax.f32 %v676, 0.0
    %v727 = vmax.f32 %v717, 0.0
    %v728 = vmax.f32 %v719, 0.0
    %v729 = vmax.f32 %v678, 0.0
    %v730 = vmax.f32 %v680, 0.0
    %v731 = vmax.f32 %v721, 0.0
    %v732 = vmax.f32 %v723, 0.0
    %v733 = vpack.c.bf16 %v729, %v725
    %v734 = vpack.c.bf16 %v730, %v726
    %v735 = vpack.c.bf16 %v731, %v727
    %v736 = vpack.c.bf16 %v732, %v728
    %v737 = vld [vmem:[#allocation6] sm:$0xff]
    %v738 = vld [vmem:[#allocation6 + $0x8] sm:$0xff]
    %v739 = vld [vmem:[#allocation6 + $0x10] sm:$0xff]
    %v740 = vld [vmem:[#allocation6 + $0x18] sm:$0xf]
    %v741 = vld [vmem:[#allocation6 + $0x1c] sm:$0xff]
    %v742 = vld [vmem:[#allocation6 + $0x24] sm:$0xff]
    %v743 = vld [vmem:[#allocation6 + $0x2c] sm:$0xff]
    %v744 = vld [vmem:[#allocation6 + $0x34] sm:$0xf]
    %v745 = vld [vmem:[#allocation6 + $0x38] sm:$0xff]
    %v746 = vld [vmem:[#allocation6 + $0x40] sm:$0xff]
    %v747 = vld [vmem:[#allocation6 + $0x48] sm:$0xff]
    %v748 = vld [vmem:[#allocation6 + $0x50] sm:$0xf]
    %v749 = vld [vmem:[#allocation6 + $0x54] sm:$0xff]
    %v750 = vld [vmem:[#allocation6 + $0x5c] sm:$0xff]
    %v751 = vld [vmem:[#allocation6 + $0x64] sm:$0xff]
    %v752 = vld [vmem:[#allocation6 + $0x6c] sm:$0xf]
    %v753 = vld [vmem:[#allocation6 + $0x70] sm:$0xff]
    %v754 = vld [vmem:[#allocation6 + $0x78] sm:$0xff]
    %v755 = vld [vmem:[#allocation6 + $0x80] sm:$0xff]
    %v756 = vld [vmem:[#allocation6 + $0x88] sm:$0xf]
    %v757 = vld [vmem:[#allocation6 + $0x8c] sm:$0xff]
    %v758 = vld [vmem:[#allocation6 + $0x94] sm:$0xff]
    %v759 = vld [vmem:[#allocation6 + $0x9c] sm:$0xff]
    %v760 = vld [vmem:[#allocation6 + $0xa4] sm:$0xf]
    %v761 = vld [vmem:[#allocation6 + $0xa8] sm:$0xff]
    %v762 = vld [vmem:[#allocation6 + $0xb0] sm:$0xff]
    %v763 = vld [vmem:[#allocation6 + $0xb8] sm:$0xff]
    %v764 = vld [vmem:[#allocation6 + $0xc0] sm:$0xf]
    %v765 = vld [vmem:[#allocation6 + $0xc4] sm:$0xff]
    %v766 = vld [vmem:[#allocation6 + $0xcc] sm:$0xff]
    %v767 = vld [vmem:[#allocation6 + $0xd4] sm:$0xff]
    %v768 = vld [vmem:[#allocation6 + $0xdc] sm:$0xf]
    %v769 = vld [vmem:[#allocation6 + $0xe0] sm:$0xff]
    %v770 = vld [vmem:[#allocation6 + $0xe8] sm:$0xff]
    %v771 = vld [vmem:[#allocation6 + $0xf0] sm:$0xff]
    %v772 = vld [vmem:[#allocation6 + $0xf8] sm:$0xf]
    %v773 = vld [vmem:[#allocation6 + $0xfc] sm:$0xff]
    %v774 = vld [vmem:[#allocation6 + $0x104] sm:$0xff]
    %v775 = vld [vmem:[#allocation6 + $0x10c] sm:$0xff]
    %v776 = vld [vmem:[#allocation6 + $0x114] sm:$0xf]
    %v777 = vld [vmem:[#allocation6 + $0x118] sm:$0xff]
    %v778 = vld [vmem:[#allocation6 + $0x120] sm:$0xff]
    %v779 = vld [vmem:[#allocation6 + $0x128] sm:$0xff]
    %v780 = vld [vmem:[#allocation6 + $0x130] sm:$0xf]
    %v781 = vld [vmem:[#allocation6 + $0x134] sm:$0xff]
    %v782 = vld [vmem:[#allocation6 + $0x13c] sm:$0xff]
    %v783 = vld [vmem:[#allocation6 + $0x144] sm:$0xff]
    %v784 = vld [vmem:[#allocation6 + $0x14c] sm:$0xf]
    %v785 = vld [vmem:[#allocation6 + $0x150] sm:$0xff]
    %v786 = vld [vmem:[#allocation6 + $0x158] sm:$0xff]
    %v787 = vld [vmem:[#allocation6 + $0x160] sm:$0xff]
    %v788 = vld [vmem:[#allocation6 + $0x168] sm:$0xf]
    %v789 = vld [vmem:[#allocation6 + $0x16c] sm:$0xff]
    %v790 = vld [vmem:[#allocation6 + $0x174] sm:$0xff]
    %v791 = vld [vmem:[#allocation6 + $0x17c] sm:$0xff]
    %v792 = vld [vmem:[#allocation6 + $0x184] sm:$0xf]
    %v793 = vld [vmem:[#allocation6 + $0x188] sm:$0xff]
    %v794 = vld [vmem:[#allocation6 + $0x190] sm:$0xff]
    %v795 = vld [vmem:[#allocation6 + $0x198] sm:$0xff]
    %v796 = vld [vmem:[#allocation6 + $0x1a0] sm:$0xf]
    %v797 = vld [vmem:[#allocation6 + $0x1a4] sm:$0xff]
    %v798 = vld [vmem:[#allocation6 + $0x1ac] sm:$0xff]
    %v799 = vld [vmem:[#allocation6 + $0x1b4] sm:$0xff]
    %v800 = vld [vmem:[#allocation6 + $0x1bc] sm:$0xf]
    %v801 = vld [vmem:[#allocation6 + $0x1c0] sm:$0xff]
    %v802 = vld [vmem:[#allocation6 + $0x1c8] sm:$0xff]
    %v803 = vld [vmem:[#allocation6 + $0x1d0] sm:$0xff]
    %v804 = vld [vmem:[#allocation6 + $0x1d8] sm:$0xf]
    %v805 = vld [vmem:[#allocation6 + $0x1dc] sm:$0xff]
    %v806 = vld [vmem:[#allocation6 + $0x1e4] sm:$0xff]
    %v807 = vld [vmem:[#allocation6 + $0x1ec] sm:$0xff]
    %v808 = vld [vmem:[#allocation6 + $0x1f4] sm:$0xf]
    %v809 = vld [vmem:[#allocation6 + $0x1f8] sm:$0xff]
    %v810 = vld [vmem:[#allocation6 + $0x200] sm:$0xff]
    %v811 = vld [vmem:[#allocation6 + $0x208] sm:$0xff]
    %v812 = vld [vmem:[#allocation6 + $0x210] sm:$0xf]
    %v813 = vld [vmem:[#allocation6 + $0x214] sm:$0xff]
    %v814 = vld [vmem:[#allocation6 + $0x21c] sm:$0xff]
    %v815 = vld [vmem:[#allocation6 + $0x224] sm:$0xff]
    %v816 = vld [vmem:[#allocation6 + $0x22c] sm:$0xf]
    %v817 = vld [vmem:[#allocation6 + $0x230] sm:$0xff]
    %v818 = vld [vmem:[#allocation6 + $0x238] sm:$0xff]
    %v819 = vld [vmem:[#allocation6 + $0x240] sm:$0xff]
    %v820 = vld [vmem:[#allocation6 + $0x248] sm:$0xf]
    %v821 = vld [vmem:[#allocation6 + $0x24c] sm:$0xff]
    %v822 = vld [vmem:[#allocation6 + $0x254] sm:$0xff]
    %v823 = vld [vmem:[#allocation6 + $0x25c] sm:$0xff]
    %v824 = vld [vmem:[#allocation6 + $0x264] sm:$0xf]
    %v825 = vld [vmem:[#allocation6 + $0x268] sm:$0xff]
    %v826 = vld [vmem:[#allocation6 + $0x270] sm:$0xff]
    %v827 = vld [vmem:[#allocation6 + $0x278] sm:$0xff]
    %v828 = vld [vmem:[#allocation6 + $0x280] sm:$0xf]
    %v829 = vld [vmem:[#allocation6 + $0x284] sm:$0xff]
    %v830 = vld [vmem:[#allocation6 + $0x28c] sm:$0xff]
    %v831 = vld [vmem:[#allocation6 + $0x294] sm:$0xff]
    %v832 = vld [vmem:[#allocation6 + $0x29c] sm:$0xf]
    %v833 = vld [vmem:[#allocation6 + $0x2a0] sm:$0xff]
    %v834 = vld [vmem:[#allocation6 + $0x2a8] sm:$0xff]
    %v835 = vld [vmem:[#allocation6 + $0x2b0] sm:$0xff]
    %v836 = vld [vmem:[#allocation6 + $0x2b8] sm:$0xf]
    %v837 = vld [vmem:[#allocation6 + $0x2bc] sm:$0xff]
    %v838 = vld [vmem:[#allocation6 + $0x2c4] sm:$0xff]
    %v839 = vld [vmem:[#allocation6 + $0x2cc] sm:$0xff]
    %v840 = vld [vmem:[#allocation6 + $0x2d4] sm:$0xf]
    %v841 = vld [vmem:[#allocation6 + $0x2d8] sm:$0xff]
    %v842 = vld [vmem:[#allocation6 + $0x2e0] sm:$0xff]
    %v843 = vld [vmem:[#allocation6 + $0x2e8] sm:$0xff]
    %v844 = vld [vmem:[#allocation6 + $0x2f0] sm:$0xf]
    %v845 = vld [vmem:[#allocation6 + $0x2f4] sm:$0xff]
    %v846 = vld [vmem:[#allocation6 + $0x2fc] sm:$0xff]
    %v847 = vld [vmem:[#allocation6 + $0x304] sm:$0xff]
    %v848 = vld [vmem:[#allocation6 + $0x30c] sm:$0xf]
    %v849 = vld [vmem:[#allocation6 + $0x310] sm:$0xff]
    %v850 = vld [vmem:[#allocation6 + $0x318] sm:$0xff]
    %v851 = vld [vmem:[#allocation6 + $0x320] sm:$0xff]
    %v852 = vld [vmem:[#allocation6 + $0x328] sm:$0xf]
    %v853 = vld [vmem:[#allocation6 + $0x32c] sm:$0xff]
    %v854 = vld [vmem:[#allocation6 + $0x334] sm:$0xff]
    %v855 = vld [vmem:[#allocation6 + $0x33c] sm:$0xff]
    %v856 = vld [vmem:[#allocation6 + $0x344] sm:$0xf]
    %v857 = vld [vmem:[#allocation6 + $0x348] sm:$0xff]
    %v858 = vld [vmem:[#allocation6 + $0x350] sm:$0xff]
    %v859 = vld [vmem:[#allocation6 + $0x358] sm:$0xff]
    %v860 = vld [vmem:[#allocation6 + $0x360] sm:$0xf]
    %v861 = vld [vmem:[#allocation6 + $0x364] sm:$0xff]
    %v862 = vld [vmem:[#allocation6 + $0x36c] sm:$0xff]
    %v863 = vld [vmem:[#allocation6 + $0x374] sm:$0xff]
    %v864 = vld [vmem:[#allocation6 + $0x37c] sm:$0xf]
    %v865 = vld [vmem:[#allocation6 + $0x380] sm:$0xff]
    %v866 = vld [vmem:[#allocation6 + $0x388] sm:$0xff]
    %v867 = vld [vmem:[#allocation6 + $0x390] sm:$0xff]
    %v868 = vld [vmem:[#allocation6 + $0x398] sm:$0xf]
    %v869 = vld [vmem:[#allocation6 + $0x39c] sm:$0xff]
    %v870 = vld [vmem:[#allocation6 + $0x3a4] sm:$0xff]
    %v871 = vld [vmem:[#allocation6 + $0x3ac] sm:$0xff]
    %v872 = vld [vmem:[#allocation6 + $0x3b4] sm:$0xf]
    %v873 = vld [vmem:[#allocation6 + $0x3b8] sm:$0xff]
    %v874 = vld [vmem:[#allocation6 + $0x3c0] sm:$0xff]
    %v875 = vld [vmem:[#allocation6 + $0x3c8] sm:$0xff]
    %v876 = vld [vmem:[#allocation6 + $0x3d0] sm:$0xf]
    %v877 = vld [vmem:[#allocation6 + $0x3d4] sm:$0xff]
    %v878 = vld [vmem:[#allocation6 + $0x3dc] sm:$0xff]
    %v879 = vld [vmem:[#allocation6 + $0x3e4] sm:$0xff]
    %v880 = vld [vmem:[#allocation6 + $0x3ec] sm:$0xf]
    %v881 = vld [vmem:[#allocation6 + $0x3f0] sm:$0xff]
    %v882 = vld [vmem:[#allocation6 + $0x3f8] sm:$0xff]
    %v883 = vld [vmem:[#allocation6 + $0x400] sm:$0xff]
    %v884 = vld [vmem:[#allocation6 + $0x408] sm:$0xf]
    %v885 = vld [vmem:[#allocation6 + $0x40c] sm:$0xff]
    %v886 = vld [vmem:[#allocation6 + $0x414] sm:$0xff]
    %v887 = vld [vmem:[#allocation6 + $0x41c] sm:$0xff]
    %v888 = vld [vmem:[#allocation6 + $0x424] sm:$0xf]
    %v889 = vld [vmem:[#allocation6 + $0x428] sm:$0xff]
    %v890 = vld [vmem:[#allocation6 + $0x430] sm:$0xff]
    %v891 = vld [vmem:[#allocation6 + $0x438] sm:$0xff]
    %v892 = vld [vmem:[#allocation6 + $0x440] sm:$0xf]
    %v893 = vld [vmem:[#allocation6 + $0x444] sm:$0xff]
    %v894 = vld [vmem:[#allocation6 + $0x44c] sm:$0xff]
    %v895 = vld [vmem:[#allocation6 + $0x454] sm:$0xff]
    %v896 = vld [vmem:[#allocation6 + $0x45c] sm:$0xf]
    %v897 = vld [vmem:[#allocation6 + $0x460] sm:$0xff]
    %v898 = vld [vmem:[#allocation6 + $0x468] sm:$0xff]
    %v899 = vld [vmem:[#allocation6 + $0x470] sm:$0xff]
    %v900 = vld [vmem:[#allocation6 + $0x478] sm:$0xf]
    %v901 = vld [vmem:[#allocation6 + $0x47c] sm:$0xff]
    %v902 = vld [vmem:[#allocation6 + $0x484] sm:$0xff]
    %v903 = vld [vmem:[#allocation6 + $0x48c] sm:$0xff]
    %v904 = vld [vmem:[#allocation6 + $0x494] sm:$0xf]
    %v905 = vld [vmem:[#allocation6 + $0x498] sm:$0xff]
    %v906 = vld [vmem:[#allocation6 + $0x4a0] sm:$0xff]
    %v907 = vld [vmem:[#allocation6 + $0x4a8] sm:$0xff]
    %v908 = vld [vmem:[#allocation6 + $0x4b0] sm:$0xf]
    %v909 = vld [vmem:[#allocation6 + $0x4b4] sm:$0xff]
    %v910 = vld [vmem:[#allocation6 + $0x4bc] sm:$0xff]
    %v911 = vld [vmem:[#allocation6 + $0x4c4] sm:$0xff]
    %v912 = vld [vmem:[#allocation6 + $0x4cc] sm:$0xf]
    %v913 = vld [vmem:[#allocation6 + $0x4d0] sm:$0xff]
    %v914 = vld [vmem:[#allocation6 + $0x4d8] sm:$0xff]
    %v915 = vld [vmem:[#allocation6 + $0x4e0] sm:$0xff]
    %v916 = vld [vmem:[#allocation6 + $0x4e8] sm:$0xf]
    %v917 = vld [vmem:[#allocation6 + $0x4ec] sm:$0xff]
    %v918 = vld [vmem:[#allocation6 + $0x4f4] sm:$0xff]
    %v919 = vld [vmem:[#allocation6 + $0x4fc] sm:$0xff]
    %v920 = vld [vmem:[#allocation6 + $0x504] sm:$0xf]
    %v921 = vld [vmem:[#allocation6 + $0x508] sm:$0xff]
    %v922 = vld [vmem:[#allocation6 + $0x510] sm:$0xff]
    %v923 = vld [vmem:[#allocation6 + $0x518] sm:$0xff]
    %v924 = vld [vmem:[#allocation6 + $0x520] sm:$0xf]
    %v925 = vld [vmem:[#allocation6 + $0x524] sm:$0xff]
    %v926 = vld [vmem:[#allocation6 + $0x52c] sm:$0xff]
    %v927 = vld [vmem:[#allocation6 + $0x534] sm:$0xff]
    %v928 = vld [vmem:[#allocation6 + $0x53c] sm:$0xf]
    %v929 = vld [vmem:[#allocation6 + $0x540] sm:$0xff]
    %v930 = vld [vmem:[#allocation6 + $0x548] sm:$0xff]
    %v931 = vld [vmem:[#allocation6 + $0x550] sm:$0xff]
    %v932 = vld [vmem:[#allocation6 + $0x558] sm:$0xf]
    %v933 = vld [vmem:[#allocation6 + $0x55c] sm:$0xff]
    %v934 = vld [vmem:[#allocation6 + $0x564] sm:$0xff]
    %v935 = vld [vmem:[#allocation6 + $0x56c] sm:$0xff]
    %v936 = vld [vmem:[#allocation6 + $0x574] sm:$0xf]
    %v937 = vld [vmem:[#allocation6 + $0x578] sm:$0xff]
    %v938 = vld [vmem:[#allocation6 + $0x580] sm:$0xff]
    %v939 = vld [vmem:[#allocation6 + $0x588] sm:$0xff]
    %v940 = vld [vmem:[#allocation6 + $0x590] sm:$0xf]
    %v941 = vld [vmem:[#allocation6 + $0x594] sm:$0xff]
    %v942 = vld [vmem:[#allocation6 + $0x59c] sm:$0xff]
    %v943 = vld [vmem:[#allocation6 + $0x5a4] sm:$0xff]
    %v944 = vld [vmem:[#allocation6 + $0x5ac] sm:$0xf]
    %v945 = vld [vmem:[#allocation6 + $0x5b0] sm:$0xff]
    %v946 = vld [vmem:[#allocation6 + $0x5b8] sm:$0xff]
    %v947 = vld [vmem:[#allocation6 + $0x5c0] sm:$0xff]
    %v948 = vld [vmem:[#allocation6 + $0x5c8] sm:$0xf]
    %v949 = vld [vmem:[#allocation6 + $0x5cc] sm:$0xff]
    %v950 = vld [vmem:[#allocation6 + $0x5d4] sm:$0xff]
    %v951 = vld [vmem:[#allocation6 + $0x5dc] sm:$0xff]
    %v952 = vld [vmem:[#allocation6 + $0x5e4] sm:$0xf]
    %v953 = vld [vmem:[#allocation6 + $0x5e8] sm:$0xff]
    %v954 = vld [vmem:[#allocation6 + $0x5f0] sm:$0xff]
    %v955 = vld [vmem:[#allocation6 + $0x5f8] sm:$0xff]
    %v956 = vld [vmem:[#allocation6 + $0x600] sm:$0xf]
    %v957 = vld [vmem:[#allocation6 + $0x604] sm:$0xff]
    %v958 = vld [vmem:[#allocation6 + $0x60c] sm:$0xff]
    %v959 = vld [vmem:[#allocation6 + $0x614] sm:$0xff]
    %v960 = vld [vmem:[#allocation6 + $0x61c] sm:$0xf]
    %v961 = vld [vmem:[#allocation6 + $0x620] sm:$0xff]
    %v962 = vld [vmem:[#allocation6 + $0x628] sm:$0xff]
    %v963 = vld [vmem:[#allocation6 + $0x630] sm:$0xff]
    %v964 = vld [vmem:[#allocation6 + $0x638] sm:$0xf]
    %v965 = vld [vmem:[#allocation6 + $0x63c] sm:$0xff]
    %v966 = vld [vmem:[#allocation6 + $0x644] sm:$0xff]
    %v967 = vld [vmem:[#allocation6 + $0x64c] sm:$0xff]
    %v968 = vld [vmem:[#allocation6 + $0x654] sm:$0xf]
    %v969 = vld [vmem:[#allocation6 + $0x658] sm:$0xff]
    %v970 = vld [vmem:[#allocation6 + $0x660] sm:$0xff]
    %v971 = vld [vmem:[#allocation6 + $0x668] sm:$0xff]
    %v972 = vld [vmem:[#allocation6 + $0x670] sm:$0xf]
    %v973 = vld [vmem:[#allocation6 + $0x674] sm:$0xff]
    %v974 = vld [vmem:[#allocation6 + $0x67c] sm:$0xff]
    %v975 = vld [vmem:[#allocation6 + $0x684] sm:$0xff]
    %v976 = vld [vmem:[#allocation6 + $0x68c] sm:$0xf]
    %v977 = vld [vmem:[#allocation6 + $0x690] sm:$0xff]
    %v978 = vld [vmem:[#allocation6 + $0x698] sm:$0xff]
    %v979 = vld [vmem:[#allocation6 + $0x6a0] sm:$0xff]
    %v980 = vld [vmem:[#allocation6 + $0x6a8] sm:$0xf]
    %v981 = vld [vmem:[#allocation6 + $0x6ac] sm:$0xff]
    %v982 = vld [vmem:[#allocation6 + $0x6b4] sm:$0xff]
    %v983 = vld [vmem:[#allocation6 + $0x6bc] sm:$0xff]
    %v984 = vld [vmem:[#allocation6 + $0x6c4] sm:$0xf]
    %v985 = vld [vmem:[#allocation6 + $0x6c8] sm:$0xff]
    %v986 = vld [vmem:[#allocation6 + $0x6d0] sm:$0xff]
    %v987 = vld [vmem:[#allocation6 + $0x6d8] sm:$0xff]
    %v988 = vld [vmem:[#allocation6 + $0x6e0] sm:$0xf]
    %v989 = vld [vmem:[#allocation6 + $0x6e4] sm:$0xff]
    %v990 = vld [vmem:[#allocation6 + $0x6ec] sm:$0xff]
    %v991 = vld [vmem:[#allocation6 + $0x6f4] sm:$0xff]
    %v992 = vld [vmem:[#allocation6 + $0x6fc] sm:$0xf]
    %v993 = vld [vmem:[%s6] sm:$0xff]
    %v995 = vlaneseq
    %v996 = vshrl.u32 %v995, 7
    %v997 = vsub.s32 0, %v996
    %v998 = vrot.slane %v993, %v997
    %v999 = vlaneseq
    %v1000 = vshrl.u32 %v999, 7
    %v1001 = vsub.s32 1, %v1000
    %v1002 = vrot.slane %v993, %v1001
    %v1003 = vlaneseq
    %v1004 = vshrl.u32 %v1003, 7
    %v1005 = vsub.s32 2, %v1004
    %v1006 = vrot.slane %v993, %v1005
    %v1007 = vlaneseq
    %v1008 = vshrl.u32 %v1007, 7
    %v1009 = vsub.s32 3, %v1008
    %v1010 = vrot.slane %v993, %v1009
    %v1011 = vlaneseq
    %v1012 = vshrl.u32 %v1011, 7
    %v1013 = vsub.s32 4, %v1012
    %v1014 = vrot.slane %v993, %v1013
    %v1015 = vlaneseq
    %v1016 = vshrl.u32 %v1015, 7
    %v1017 = vsub.s32 5, %v1016
    %v1018 = vrot.slane %v993, %v1017
    %v1019 = vlaneseq
    %v1020 = vshrl.u32 %v1019, 7
    %v1021 = vsub.s32 6, %v1020
    %v1022 = vrot.slane %v993, %v1021
    %v1286 = vunpack.c.l.b16 %v737
    %v1287 = vunpack.c.h.b16 %v737
    %v1288 = vunpack.c.l.b16 %v738
    %v1289 = vunpack.c.h.b16 %v738
    %v1290 = vunpack.c.l.b16 %v739
    %v1291 = vunpack.c.h.b16 %v739
    %v1292 = vunpack.c.l.b16 %v740
    %v1293 = vunpack.c.l.b16 %v741
    %v1294 = vunpack.c.h.b16 %v741
    %v1295 = vunpack.c.l.b16 %v742
    %v1296 = vunpack.c.h.b16 %v742
    %v1297 = vunpack.c.l.b16 %v743
    %v1298 = vunpack.c.h.b16 %v743
    %v1299 = vunpack.c.l.b16 %v744
    %v1300 = vunpack.c.l.b16 %v745
    %v1301 = vunpack.c.h.b16 %v745
    %v1302 = vunpack.c.l.b16 %v746
    %v1303 = vunpack.c.h.b16 %v746
    %v1304 = vunpack.c.l.b16 %v747
    %v1305 = vunpack.c.h.b16 %v747
    %v1306 = vunpack.c.l.b16 %v748
    %v1307 = vunpack.c.l.b16 %v749
    %v1308 = vunpack.c.h.b16 %v749
    %v1309 = vunpack.c.l.b16 %v750
    %v1310 = vunpack.c.h.b16 %v750
    %v1311 = vunpack.c.l.b16 %v751
    %v1312 = vunpack.c.h.b16 %v751
    %v1313 = vunpack.c.l.b16 %v752
    %v1314 = vunpack.c.l.b16 %v753
    %v1315 = vunpack.c.h.b16 %v753
    %v1316 = vunpack.c.l.b16 %v754
    %v1317 = vunpack.c.h.b16 %v754
    %v1318 = vunpack.c.l.b16 %v755
    %v1319 = vunpack.c.h.b16 %v755
    %v1320 = vunpack.c.l.b16 %v756
    %v1321 = vunpack.c.l.b16 %v757
    %v1322 = vunpack.c.h.b16 %v757
    %v1323 = vunpack.c.l.b16 %v758
    %v1324 = vunpack.c.h.b16 %v758
    %v1325 = vunpack.c.l.b16 %v759
    %v1326 = vunpack.c.h.b16 %v759
    %v1327 = vunpack.c.l.b16 %v760
    %v1328 = vunpack.c.l.b16 %v761
    %v1329 = vunpack.c.h.b16 %v761
    %v1330 = vunpack.c.l.b16 %v762
    %v1331 = vunpack.c.h.b16 %v762
    %v1332 = vunpack.c.l.b16 %v763
    %v1333 = vunpack.c.h.b16 %v763
    %v1334 = vunpack.c.l.b16 %v764
    %v1335 = vunpack.c.l.b16 %v765
    %v1336 = vunpack.c.h.b16 %v765
    %v1337 = vunpack.c.l.b16 %v766
    %v1338 = vunpack.c.h.b16 %v766
    %v1339 = vunpack.c.l.b16 %v767
    %v1340 = vunpack.c.h.b16 %v767
    %v1341 = vunpack.c.l.b16 %v768
    %v1342 = vunpack.c.l.b16 %v769
    %v1343 = vunpack.c.h.b16 %v769
    %v1344 = vunpack.c.l.b16 %v770
    %v1345 = vunpack.c.h.b16 %v770
    %v1346 = vunpack.c.l.b16 %v771
    %v1347 = vunpack.c.h.b16 %v771
    %v1348 = vunpack.c.l.b16 %v772
    %v1349 = vunpack.c.l.b16 %v773
    %v1350 = vunpack.c.h.b16 %v773
    %v1351 = vunpack.c.l.b16 %v774
    %v1352 = vunpack.c.h.b16 %v774
    %v1353 = vunpack.c.l.b16 %v775
    %v1354 = vunpack.c.h.b16 %v775
    %v1355 = vunpack.c.l.b16 %v776
    %v1356 = vunpack.c.l.b16 %v777
    %v1357 = vunpack.c.h.b16 %v777
    %v1358 = vunpack.c.l.b16 %v778
    %v1359 = vunpack.c.h.b16 %v778
    %v1360 = vunpack.c.l.b16 %v779
    %v1361 = vunpack.c.h.b16 %v779
    %v1362 = vunpack.c.l.b16 %v780
    %v1363 = vunpack.c.l.b16 %v781
    %v1364 = vunpack.c.h.b16 %v781
    %v1365 = vunpack.c.l.b16 %v782
    %v1366 = vunpack.c.h.b16 %v782
    %v1367 = vunpack.c.l.b16 %v783
    %v1368 = vunpack.c.h.b16 %v783
    %v1369 = vunpack.c.l.b16 %v784
    %v1370 = vunpack.c.l.b16 %v785
    %v1371 = vunpack.c.h.b16 %v785
    %v1372 = vunpack.c.l.b16 %v786
    %v1373 = vunpack.c.h.b16 %v786
    %v1374 = vunpack.c.l.b16 %v787
    %v1375 = vunpack.c.h.b16 %v787
    %v1376 = vunpack.c.l.b16 %v788
    %v1377 = vunpack.c.l.b16 %v789
    %v1378 = vunpack.c.h.b16 %v789
    %v1379 = vunpack.c.l.b16 %v790
    %v1380 = vunpack.c.h.b16 %v790
    %v1381 = vunpack.c.l.b16 %v791
    %v1382 = vunpack.c.h.b16 %v791
    %v1383 = vunpack.c.l.b16 %v792
    %v1384 = vunpack.c.l.b16 %v793
    %v1385 = vunpack.c.h.b16 %v793
    %v1386 = vunpack.c.l.b16 %v794
    %v1387 = vunpack.c.h.b16 %v794
    %v1388 = vunpack.c.l.b16 %v795
    %v1389 = vunpack.c.h.b16 %v795
    %v1390 = vunpack.c.l.b16 %v796
    %v1391 = vunpack.c.l.b16 %v797
    %v1392 = vunpack.c.h.b16 %v797
    %v1393 = vunpack.c.l.b16 %v798
    %v1394 = vunpack.c.h.b16 %v798
    %v1395 = vunpack.c.l.b16 %v799
    %v1396 = vunpack.c.h.b16 %v799
    %v1397 = vunpack.c.l.b16 %v800
    %v1398 = vunpack.c.l.b16 %v801
    %v1399 = vunpack.c.h.b16 %v801
    %v1400 = vunpack.c.l.b16 %v802
    %v1401 = vunpack.c.h.b16 %v802
    %v1402 = vunpack.c.l.b16 %v803
    %v1403 = vunpack.c.h.b16 %v803
    %v1404 = vunpack.c.l.b16 %v804
    %v1405 = vunpack.c.l.b16 %v805
    %v1406 = vunpack.c.h.b16 %v805
    %v1407 = vunpack.c.l.b16 %v806
    %v1408 = vunpack.c.h.b16 %v806
    %v1409 = vunpack.c.l.b16 %v807
    %v1410 = vunpack.c.h.b16 %v807
    %v1411 = vunpack.c.l.b16 %v808
    %v1412 = vunpack.c.l.b16 %v809
    %v1413 = vunpack.c.h.b16 %v809
    %v1414 = vunpack.c.l.b16 %v810
    %v1415 = vunpack.c.h.b16 %v810
    %v1416 = vunpack.c.l.b16 %v811
    %v1417 = vunpack.c.h.b16 %v811
    %v1418 = vunpack.c.l.b16 %v812
    %v1419 = vunpack.c.l.b16 %v813
    %v1420 = vunpack.c.h.b16 %v813
    %v1421 = vunpack.c.l.b16 %v814
    %v1422 = vunpack.c.h.b16 %v814
    %v1423 = vunpack.c.l.b16 %v815
    %v1424 = vunpack.c.h.b16 %v815
    %v1425 = vunpack.c.l.b16 %v816
    %v1426 = vunpack.c.l.b16 %v817
    %v1427 = vunpack.c.h.b16 %v817
    %v1428 = vunpack.c.l.b16 %v818
    %v1429 = vunpack.c.h.b16 %v818
    %v1430 = vunpack.c.l.b16 %v819
    %v1431 = vunpack.c.h.b16 %v819
    %v1432 = vunpack.c.l.b16 %v820
    %v1433 = vunpack.c.l.b16 %v821
    %v1434 = vunpack.c.h.b16 %v821
    %v1435 = vunpack.c.l.b16 %v822
    %v1436 = vunpack.c.h.b16 %v822
    %v1437 = vunpack.c.l.b16 %v823
    %v1438 = vunpack.c.h.b16 %v823
    %v1439 = vunpack.c.l.b16 %v824
    %v1440 = vunpack.c.l.b16 %v825
    %v1441 = vunpack.c.h.b16 %v825
    %v1442 = vunpack.c.l.b16 %v826
    %v1443 = vunpack.c.h.b16 %v826
    %v1444 = vunpack.c.l.b16 %v827
    %v1445 = vunpack.c.h.b16 %v827
    %v1446 = vunpack.c.l.b16 %v828
    %v1447 = vunpack.c.l.b16 %v829
    %v1448 = vunpack.c.h.b16 %v829
    %v1449 = vunpack.c.l.b16 %v830
    %v1450 = vunpack.c.h.b16 %v830
    %v1451 = vunpack.c.l.b16 %v831
    %v1452 = vunpack.c.h.b16 %v831
    %v1453 = vunpack.c.l.b16 %v832
    %v1454 = vunpack.c.l.b16 %v833
    %v1455 = vunpack.c.h.b16 %v833
    %v1456 = vunpack.c.l.b16 %v834
    %v1457 = vunpack.c.h.b16 %v834
    %v1458 = vunpack.c.l.b16 %v835
    %v1459 = vunpack.c.h.b16 %v835
    %v1460 = vunpack.c.l.b16 %v836
    %v1461 = vunpack.c.l.b16 %v837
    %v1462 = vunpack.c.h.b16 %v837
    %v1463 = vunpack.c.l.b16 %v838
    %v1464 = vunpack.c.h.b16 %v838
    %v1465 = vunpack.c.l.b16 %v839
    %v1466 = vunpack.c.h.b16 %v839
    %v1467 = vunpack.c.l.b16 %v840
    %v1468 = vunpack.c.l.b16 %v841
    %v1469 = vunpack.c.h.b16 %v841
    %v1470 = vunpack.c.l.b16 %v842
    %v1471 = vunpack.c.h.b16 %v842
    %v1472 = vunpack.c.l.b16 %v843
    %v1473 = vunpack.c.h.b16 %v843
    %v1474 = vunpack.c.l.b16 %v844
    %v1475 = vunpack.c.l.b16 %v845
    %v1476 = vunpack.c.h.b16 %v845
    %v1477 = vunpack.c.l.b16 %v846
    %v1478 = vunpack.c.h.b16 %v846
    %v1479 = vunpack.c.l.b16 %v847
    %v1480 = vunpack.c.h.b16 %v847
    %v1481 = vunpack.c.l.b16 %v848
    %v1482 = vunpack.c.l.b16 %v849
    %v1483 = vunpack.c.h.b16 %v849
    %v1484 = vunpack.c.l.b16 %v850
    %v1485 = vunpack.c.h.b16 %v850
    %v1486 = vunpack.c.l.b16 %v851
    %v1487 = vunpack.c.h.b16 %v851
    %v1488 = vunpack.c.l.b16 %v852
    %v1489 = vunpack.c.l.b16 %v853
    %v1490 = vunpack.c.h.b16 %v853
    %v1491 = vunpack.c.l.b16 %v854
    %v1492 = vunpack.c.h.b16 %v854
    %v1493 = vunpack.c.l.b16 %v855
    %v1494 = vunpack.c.h.b16 %v855
    %v1495 = vunpack.c.l.b16 %v856
    %v1496 = vunpack.c.l.b16 %v857
    %v1497 = vunpack.c.h.b16 %v857
    %v1498 = vunpack.c.l.b16 %v858
    %v1499 = vunpack.c.h.b16 %v858
    %v1500 = vunpack.c.l.b16 %v859
    %v1501 = vunpack.c.h.b16 %v859
    %v1502 = vunpack.c.l.b16 %v860
    %v1503 = vunpack.c.l.b16 %v861
    %v1504 = vunpack.c.h.b16 %v861
    %v1505 = vunpack.c.l.b16 %v862
    %v1506 = vunpack.c.h.b16 %v862
    %v1507 = vunpack.c.l.b16 %v863
    %v1508 = vunpack.c.h.b16 %v863
    %v1509 = vunpack.c.l.b16 %v864
    %v1510 = vunpack.c.l.b16 %v865
    %v1511 = vunpack.c.h.b16 %v865
    %v1512 = vunpack.c.l.b16 %v866
    %v1513 = vunpack.c.h.b16 %v866
    %v1514 = vunpack.c.l.b16 %v867
    %v1515 = vunpack.c.h.b16 %v867
    %v1516 = vunpack.c.l.b16 %v868
    %v1517 = vunpack.c.l.b16 %v869
    %v1518 = vunpack.c.h.b16 %v869
    %v1519 = vunpack.c.l.b16 %v870
    %v1520 = vunpack.c.h.b16 %v870
    %v1521 = vunpack.c.l.b16 %v871
    %v1522 = vunpack.c.h.b16 %v871
    %v1523 = vunpack.c.l.b16 %v872
    %v1524 = vunpack.c.l.b16 %v873
    %v1525 = vunpack.c.h.b16 %v873
    %v1526 = vunpack.c.l.b16 %v874
    %v1527 = vunpack.c.h.b16 %v874
    %v1528 = vunpack.c.l.b16 %v875
    %v1529 = vunpack.c.h.b16 %v875
    %v1530 = vunpack.c.l.b16 %v876
    %v1531 = vunpack.c.l.b16 %v877
    %v1532 = vunpack.c.h.b16 %v877
    %v1533 = vunpack.c.l.b16 %v878
    %v1534 = vunpack.c.h.b16 %v878
    %v1535 = vunpack.c.l.b16 %v879
    %v1536 = vunpack.c.h.b16 %v879
    %v1537 = vunpack.c.l.b16 %v880
    %v1538 = vunpack.c.l.b16 %v881
    %v1539 = vunpack.c.h.b16 %v881
    %v1540 = vunpack.c.l.b16 %v882
    %v1541 = vunpack.c.h.b16 %v882
    %v1542 = vunpack.c.l.b16 %v883
    %v1543 = vunpack.c.h.b16 %v883
    %v1544 = vunpack.c.l.b16 %v884
    %v1545 = vunpack.c.l.b16 %v885
    %v1546 = vunpack.c.h.b16 %v885
    %v1547 = vunpack.c.l.b16 %v886
    %v1548 = vunpack.c.h.b16 %v886
    %v1549 = vunpack.c.l.b16 %v887
    %v1550 = vunpack.c.h.b16 %v887
    %v1551 = vunpack.c.l.b16 %v888
    %v1552 = vunpack.c.l.b16 %v889
    %v1553 = vunpack.c.h.b16 %v889
    %v1554 = vunpack.c.l.b16 %v890
    %v1555 = vunpack.c.h.b16 %v890
    %v1556 = vunpack.c.l.b16 %v891
    %v1557 = vunpack.c.h.b16 %v891
    %v1558 = vunpack.c.l.b16 %v892
    %v1559 = vunpack.c.l.b16 %v893
    %v1560 = vunpack.c.h.b16 %v893
    %v1561 = vunpack.c.l.b16 %v894
    %v1562 = vunpack.c.h.b16 %v894
    %v1563 = vunpack.c.l.b16 %v895
    %v1564 = vunpack.c.h.b16 %v895
    %v1565 = vunpack.c.l.b16 %v896
    %v1566 = vunpack.c.l.b16 %v897
    %v1567 = vunpack.c.h.b16 %v897
    %v1568 = vunpack.c.l.b16 %v898
    %v1569 = vunpack.c.h.b16 %v898
    %v1570 = vunpack.c.l.b16 %v899
    %v1571 = vunpack.c.h.b16 %v899
    %v1572 = vunpack.c.l.b16 %v900
    %v1573 = vunpack.c.l.b16 %v901
    %v1574 = vunpack.c.h.b16 %v901
    %v1575 = vunpack.c.l.b16 %v902
    %v1576 = vunpack.c.h.b16 %v902
    %v1577 = vunpack.c.l.b16 %v903
    %v1578 = vunpack.c.h.b16 %v903
    %v1579 = vunpack.c.l.b16 %v904
    %v1580 = vunpack.c.l.b16 %v905
    %v1581 = vunpack.c.h.b16 %v905
    %v1582 = vunpack.c.l.b16 %v906
    %v1583 = vunpack.c.h.b16 %v906
    %v1584 = vunpack.c.l.b16 %v907
    %v1585 = vunpack.c.h.b16 %v907
    %v1586 = vunpack.c.l.b16 %v908
    %v1587 = vunpack.c.l.b16 %v909
    %v1588 = vunpack.c.h.b16 %v909
    %v1589 = vunpack.c.l.b16 %v910
    %v1590 = vunpack.c.h.b16 %v910
    %v1591 = vunpack.c.l.b16 %v911
    %v1592 = vunpack.c.h.b16 %v911
    %v1593 = vunpack.c.l.b16 %v912
    %v1594 = vunpack.c.l.b16 %v913
    %v1595 = vunpack.c.h.b16 %v913
    %v1596 = vunpack.c.l.b16 %v914
    %v1597 = vunpack.c.h.b16 %v914
    %v1598 = vunpack.c.l.b16 %v915
    %v1599 = vunpack.c.h.b16 %v915
    %v1600 = vunpack.c.l.b16 %v916
    %v1601 = vunpack.c.l.b16 %v917
    %v1602 = vunpack.c.h.b16 %v917
    %v1603 = vunpack.c.l.b16 %v918
    %v1604 = vunpack.c.h.b16 %v918
    %v1605 = vunpack.c.l.b16 %v919
    %v1606 = vunpack.c.h.b16 %v919
    %v1607 = vunpack.c.l.b16 %v920
    %v1608 = vunpack.c.l.b16 %v921
    %v1609 = vunpack.c.h.b16 %v921
    %v1610 = vunpack.c.l.b16 %v922
    %v1611 = vunpack.c.h.b16 %v922
    %v1612 = vunpack.c.l.b16 %v923
    %v1613 = vunpack.c.h.b16 %v923
    %v1614 = vunpack.c.l.b16 %v924
    %v1615 = vunpack.c.l.b16 %v925
    %v1616 = vunpack.c.h.b16 %v925
    %v1617 = vunpack.c.l.b16 %v926
    %v1618 = vunpack.c.h.b16 %v926
    %v1619 = vunpack.c.l.b16 %v927
    %v1620 = vunpack.c.h.b16 %v927
    %v1621 = vunpack.c.l.b16 %v928
    %v1622 = vunpack.c.l.b16 %v929
    %v1623 = vunpack.c.h.b16 %v929
    %v1624 = vunpack.c.l.b16 %v930
    %v1625 = vunpack.c.h.b16 %v930
    %v1626 = vunpack.c.l.b16 %v931
    %v1627 = vunpack.c.h.b16 %v931
    %v1628 = vunpack.c.l.b16 %v932
    %v1629 = vunpack.c.l.b16 %v933
    %v1630 = vunpack.c.h.b16 %v933
    %v1631 = vunpack.c.l.b16 %v934
    %v1632 = vunpack.c.h.b16 %v934
    %v1633 = vunpack.c.l.b16 %v935
    %v1634 = vunpack.c.h.b16 %v935
    %v1635 = vunpack.c.l.b16 %v936
    %v1636 = vunpack.c.l.b16 %v937
    %v1637 = vunpack.c.h.b16 %v937
    %v1638 = vunpack.c.l.b16 %v938
    %v1639 = vunpack.c.h.b16 %v938
    %v1640 = vunpack.c.l.b16 %v939
    %v1641 = vunpack.c.h.b16 %v939
    %v1642 = vunpack.c.l.b16 %v940
    %v1643 = vunpack.c.l.b16 %v941
    %v1644 = vunpack.c.h.b16 %v941
    %v1645 = vunpack.c.l.b16 %v942
    %v1646 = vunpack.c.h.b16 %v942
    %v1647 = vunpack.c.l.b16 %v943
    %v1648 = vunpack.c.h.b16 %v943
    %v1649 = vunpack.c.l.b16 %v944
    %v1650 = vunpack.c.l.b16 %v945
    %v1651 = vunpack.c.h.b16 %v945
    %v1652 = vunpack.c.l.b16 %v946
    %v1653 = vunpack.c.h.b16 %v946
    %v1654 = vunpack.c.l.b16 %v947
    %v1655 = vunpack.c.h.b16 %v947
    %v1656 = vunpack.c.l.b16 %v948
    %v1657 = vunpack.c.l.b16 %v949
    %v1658 = vunpack.c.h.b16 %v949
    %v1659 = vunpack.c.l.b16 %v950
    %v1660 = vunpack.c.h.b16 %v950
    %v1661 = vunpack.c.l.b16 %v951
    %v1662 = vunpack.c.h.b16 %v951
    %v1663 = vunpack.c.l.b16 %v952
    %v1664 = vunpack.c.l.b16 %v953
    %v1665 = vunpack.c.h.b16 %v953
    %v1666 = vunpack.c.l.b16 %v954
    %v1667 = vunpack.c.h.b16 %v954
    %v1668 = vunpack.c.l.b16 %v955
    %v1669 = vunpack.c.h.b16 %v955
    %v1670 = vunpack.c.l.b16 %v956
    %v1671 = vunpack.c.l.b16 %v957
    %v1672 = vunpack.c.h.b16 %v957
    %v1673 = vunpack.c.l.b16 %v958
    %v1674 = vunpack.c.h.b16 %v958
    %v1675 = vunpack.c.l.b16 %v959
    %v1676 = vunpack.c.h.b16 %v959
    %v1677 = vunpack.c.l.b16 %v960
    %v1678 = vunpack.c.l.b16 %v961
    %v1679 = vunpack.c.h.b16 %v961
    %v1680 = vunpack.c.l.b16 %v962
    %v1681 = vunpack.c.h.b16 %v962
    %v1682 = vunpack.c.l.b16 %v963
    %v1683 = vunpack.c.h.b16 %v963
    %v1684 = vunpack.c.l.b16 %v964
    %v1685 = vunpack.c.l.b16 %v965
    %v1686 = vunpack.c.h.b16 %v965
    %v1687 = vunpack.c.l.b16 %v966
    %v1688 = vunpack.c.h.b16 %v966
    %v1689 = vunpack.c.l.b16 %v967
    %v1690 = vunpack.c.h.b16 %v967
    %v1691 = vunpack.c.l.b16 %v968
    %v1692 = vunpack.c.l.b16 %v969
    %v1693 = vunpack.c.h.b16 %v969
    %v1694 = vunpack.c.l.b16 %v970
    %v1695 = vunpack.c.h.b16 %v970
    %v1696 = vunpack.c.l.b16 %v971
    %v1697 = vunpack.c.h.b16 %v971
    %v1698 = vunpack.c.l.b16 %v972
    %v1699 = vunpack.c.l.b16 %v973
    %v1700 = vunpack.c.h.b16 %v973
    %v1701 = vunpack.c.l.b16 %v974
    %v1702 = vunpack.c.h.b16 %v974
    %v1703 = vunpack.c.l.b16 %v975
    %v1704 = vunpack.c.h.b16 %v975
    %v1705 = vunpack.c.l.b16 %v976
    %v1706 = vunpack.c.l.b16 %v977
    %v1707 = vunpack.c.h.b16 %v977
    %v1708 = vunpack.c.l.b16 %v978
    %v1709 = vunpack.c.h.b16 %v978
    %v1710 = vunpack.c.l.b16 %v979
    %v1711 = vunpack.c.h.b16 %v979
    %v1712 = vunpack.c.l.b16 %v980
    %v1713 = vunpack.c.l.b16 %v981
    %v1714 = vunpack.c.h.b16 %v981
    %v1715 = vunpack.c.l.b16 %v982
    %v1716 = vunpack.c.h.b16 %v982
    %v1717 = vunpack.c.l.b16 %v983
    %v1718 = vunpack.c.h.b16 %v983
    %v1719 = vunpack.c.l.b16 %v984
    %v1720 = vunpack.c.l.b16 %v985
    %v1721 = vunpack.c.h.b16 %v985
    %v1722 = vunpack.c.l.b16 %v986
    %v1723 = vunpack.c.h.b16 %v986
    %v1724 = vunpack.c.l.b16 %v987
    %v1725 = vunpack.c.h.b16 %v987
    %v1726 = vunpack.c.l.b16 %v988
    %v1727 = vunpack.c.l.b16 %v989
    %v1728 = vunpack.c.h.b16 %v989
    %v1729 = vunpack.c.l.b16 %v990
    %v1730 = vunpack.c.h.b16 %v990
    %v1731 = vunpack.c.l.b16 %v991
    %v1732 = vunpack.c.h.b16 %v991
    %v1733 = vunpack.c.l.b16 %v992
    %v1734 = vpack.c.b16 %v1293, %v1286
    %v1735 = vpack.c.b16 %v1294, %v1287
    %v1736 = vpack.c.b16 %v1295, %v1288
    %v1737 = vpack.c.b16 %v1296, %v1289
    %v1738 = vpack.c.b16 %v1297, %v1290
    %v1739 = vpack.c.b16 %v1298, %v1291
    %v1740 = vpack.c.b16 %v1299, %v1292
    %v1741 = vpack.c.b16 %v1307, %v1300
    %v1742 = vpack.c.b16 %v1308, %v1301
    %v1743 = vpack.c.b16 %v1309, %v1302
    %v1744 = vpack.c.b16 %v1310, %v1303
    %v1745 = vpack.c.b16 %v1311, %v1304
    %v1746 = vpack.c.b16 %v1312, %v1305
    %v1747 = vpack.c.b16 %v1313, %v1306
    %v1748 = vpack.c.b16 %v1321, %v1314
    %v1749 = vpack.c.b16 %v1322, %v1315
    %v1750 = vpack.c.b16 %v1323, %v1316
    %v1751 = vpack.c.b16 %v1324, %v1317
    %v1752 = vpack.c.b16 %v1325, %v1318
    %v1753 = vpack.c.b16 %v1326, %v1319
    %v1754 = vpack.c.b16 %v1327, %v1320
    %v1755 = vpack.c.b16 %v1335, %v1328
    %v1756 = vpack.c.b16 %v1336, %v1329
    %v1757 = vpack.c.b16 %v1337, %v1330
    %v1758 = vpack.c.b16 %v1338, %v1331
    %v1759 = vpack.c.b16 %v1339, %v1332
    %v1760 = vpack.c.b16 %v1340, %v1333
    %v1761 = vpack.c.b16 %v1341, %v1334
    %v1762 = vpack.c.b16 %v1349, %v1342
    %v1763 = vpack.c.b16 %v1350, %v1343
    %v1764 = vpack.c.b16 %v1351, %v1344
    %v1765 = vpack.c.b16 %v1352, %v1345
    %v1766 = vpack.c.b16 %v1353, %v1346
    %v1767 = vpack.c.b16 %v1354, %v1347
    %v1768 = vpack.c.b16 %v1355, %v1348
    %v1769 = vpack.c.b16 %v1363, %v1356
    %v1770 = vpack.c.b16 %v1364, %v1357
    %v1771 = vpack.c.b16 %v1365, %v1358
    %v1772 = vpack.c.b16 %v1366, %v1359
    %v1773 = vpack.c.b16 %v1367, %v1360
    %v1774 = vpack.c.b16 %v1368, %v1361
    %v1775 = vpack.c.b16 %v1369, %v1362
    %v1776 = vpack.c.b16 %v1377, %v1370
    %v1777 = vpack.c.b16 %v1378, %v1371
    %v1778 = vpack.c.b16 %v1379, %v1372
    %v1779 = vpack.c.b16 %v1380, %v1373
    %v1780 = vpack.c.b16 %v1381, %v1374
    %v1781 = vpack.c.b16 %v1382, %v1375
    %v1782 = vpack.c.b16 %v1383, %v1376
    %v1783 = vpack.c.b16 %v1391, %v1384
    %v1784 = vpack.c.b16 %v1392, %v1385
    %v1785 = vpack.c.b16 %v1393, %v1386
    %v1786 = vpack.c.b16 %v1394, %v1387
    %v1787 = vpack.c.b16 %v1395, %v1388
    %v1788 = vpack.c.b16 %v1396, %v1389
    %v1789 = vpack.c.b16 %v1397, %v1390
    %v1790 = vpack.c.b16 %v1405, %v1398
    %v1791 = vpack.c.b16 %v1406, %v1399
    %v1792 = vpack.c.b16 %v1407, %v1400
    %v1793 = vpack.c.b16 %v1408, %v1401
    %v1794 = vpack.c.b16 %v1409, %v1402
    %v1795 = vpack.c.b16 %v1410, %v1403
    %v1796 = vpack.c.b16 %v1411, %v1404
    %v1797 = vpack.c.b16 %v1419, %v1412
    %v1798 = vpack.c.b16 %v1420, %v1413
    %v1799 = vpack.c.b16 %v1421, %v1414
    %v1800 = vpack.c.b16 %v1422, %v1415
    %v1801 = vpack.c.b16 %v1423, %v1416
    %v1802 = vpack.c.b16 %v1424, %v1417
    %v1803 = vpack.c.b16 %v1425, %v1418
    %v1804 = vpack.c.b16 %v1433, %v1426
    %v1805 = vpack.c.b16 %v1434, %v1427
    %v1806 = vpack.c.b16 %v1435, %v1428
    %v1807 = vpack.c.b16 %v1436, %v1429
    %v1808 = vpack.c.b16 %v1437, %v1430
    %v1809 = vpack.c.b16 %v1438, %v1431
    %v1810 = vpack.c.b16 %v1439, %v1432
    %v1811 = vpack.c.b16 %v1447, %v1440
    %v1812 = vpack.c.b16 %v1448, %v1441
    %v1813 = vpack.c.b16 %v1449, %v1442
    %v1814 = vpack.c.b16 %v1450, %v1443
    %v1815 = vpack.c.b16 %v1451, %v1444
    %v1816 = vpack.c.b16 %v1452, %v1445
    %v1817 = vpack.c.b16 %v1453, %v1446
    %v1818 = vpack.c.b16 %v1461, %v1454
    %v1819 = vpack.c.b16 %v1462, %v1455
    %v1820 = vpack.c.b16 %v1463, %v1456
    %v1821 = vpack.c.b16 %v1464, %v1457
    %v1822 = vpack.c.b16 %v1465, %v1458
    %v1823 = vpack.c.b16 %v1466, %v1459
    %v1824 = vpack.c.b16 %v1467, %v1460
    %v1825 = vpack.c.b16 %v1475, %v1468
    %v1826 = vpack.c.b16 %v1476, %v1469
    %v1827 = vpack.c.b16 %v1477, %v1470
    %v1828 = vpack.c.b16 %v1478, %v1471
    %v1829 = vpack.c.b16 %v1479, %v1472
    %v1830 = vpack.c.b16 %v1480, %v1473
    %v1831 = vpack.c.b16 %v1481, %v1474
    %v1832 = vpack.c.b16 %v1489, %v1482
    %v1833 = vpack.c.b16 %v1490, %v1483
    %v1834 = vpack.c.b16 %v1491, %v1484
    %v1835 = vpack.c.b16 %v1492, %v1485
    %v1836 = vpack.c.b16 %v1493, %v1486
    %v1837 = vpack.c.b16 %v1494, %v1487
    %v1838 = vpack.c.b16 %v1495, %v1488
    %v1839 = vpack.c.b16 %v1503, %v1496
    %v1840 = vpack.c.b16 %v1504, %v1497
    %v1841 = vpack.c.b16 %v1505, %v1498
    %v1842 = vpack.c.b16 %v1506, %v1499
    %v1843 = vpack.c.b16 %v1507, %v1500
    %v1844 = vpack.c.b16 %v1508, %v1501
    %v1845 = vpack.c.b16 %v1509, %v1502
    %v1846 = vpack.c.b16 %v1517, %v1510
    %v1847 = vpack.c.b16 %v1518, %v1511
    %v1848 = vpack.c.b16 %v1519, %v1512
    %v1849 = vpack.c.b16 %v1520, %v1513
    %v1850 = vpack.c.b16 %v1521, %v1514
    %v1851 = vpack.c.b16 %v1522, %v1515
    %v1852 = vpack.c.b16 %v1523, %v1516
    %v1853 = vpack.c.b16 %v1531, %v1524
    %v1854 = vpack.c.b16 %v1532, %v1525
    %v1855 = vpack.c.b16 %v1533, %v1526
    %v1856 = vpack.c.b16 %v1534, %v1527
    %v1857 = vpack.c.b16 %v1535, %v1528
    %v1858 = vpack.c.b16 %v1536, %v1529
    %v1859 = vpack.c.b16 %v1537, %v1530
    %v1860 = vpack.c.b16 %v1545, %v1538
    %v1861 = vpack.c.b16 %v1546, %v1539
    %v1862 = vpack.c.b16 %v1547, %v1540
    %v1863 = vpack.c.b16 %v1548, %v1541
    %v1864 = vpack.c.b16 %v1549, %v1542
    %v1865 = vpack.c.b16 %v1550, %v1543
    %v1866 = vpack.c.b16 %v1551, %v1544
    %v1867 = vpack.c.b16 %v1559, %v1552
    %v1868 = vpack.c.b16 %v1560, %v1553
    %v1869 = vpack.c.b16 %v1561, %v1554
    %v1870 = vpack.c.b16 %v1562, %v1555
    %v1871 = vpack.c.b16 %v1563, %v1556
    %v1872 = vpack.c.b16 %v1564, %v1557
    %v1873 = vpack.c.b16 %v1565, %v1558
    %v1874 = vpack.c.b16 %v1573, %v1566
    %v1875 = vpack.c.b16 %v1574, %v1567
    %v1876 = vpack.c.b16 %v1575, %v1568
    %v1877 = vpack.c.b16 %v1576, %v1569
    %v1878 = vpack.c.b16 %v1577, %v1570
    %v1879 = vpack.c.b16 %v1578, %v1571
    %v1880 = vpack.c.b16 %v1579, %v1572
    %v1881 = vpack.c.b16 %v1587, %v1580
    %v1882 = vpack.c.b16 %v1588, %v1581
    %v1883 = vpack.c.b16 %v1589, %v1582
    %v1884 = vpack.c.b16 %v1590, %v1583
    %v1885 = vpack.c.b16 %v1591, %v1584
    %v1886 = vpack.c.b16 %v1592, %v1585
    %v1887 = vpack.c.b16 %v1593, %v1586
    %v1888 = vpack.c.b16 %v1601, %v1594
    %v1889 = vpack.c.b16 %v1602, %v1595
    %v1890 = vpack.c.b16 %v1603, %v1596
    %v1891 = vpack.c.b16 %v1604, %v1597
    %v1892 = vpack.c.b16 %v1605, %v1598
    %v1893 = vpack.c.b16 %v1606, %v1599
    %v1894 = vpack.c.b16 %v1607, %v1600
    %v1895 = vpack.c.b16 %v1615, %v1608
    %v1896 = vpack.c.b16 %v1616, %v1609
    %v1897 = vpack.c.b16 %v1617, %v1610
    %v1898 = vpack.c.b16 %v1618, %v1611
    %v1899 = vpack.c.b16 %v1619, %v1612
    %v1900 = vpack.c.b16 %v1620, %v1613
    %v1901 = vpack.c.b16 %v1621, %v1614
    %v1902 = vpack.c.b16 %v1629, %v1622
    %v1903 = vpack.c.b16 %v1630, %v1623
    %v1904 = vpack.c.b16 %v1631, %v1624
    %v1905 = vpack.c.b16 %v1632, %v1625
    %v1906 = vpack.c.b16 %v1633, %v1626
    %v1907 = vpack.c.b16 %v1634, %v1627
    %v1908 = vpack.c.b16 %v1635, %v1628
    %v1909 = vpack.c.b16 %v1643, %v1636
    %v1910 = vpack.c.b16 %v1644, %v1637
    %v1911 = vpack.c.b16 %v1645, %v1638
    %v1912 = vpack.c.b16 %v1646, %v1639
    %v1913 = vpack.c.b16 %v1647, %v1640
    %v1914 = vpack.c.b16 %v1648, %v1641
    %v1915 = vpack.c.b16 %v1649, %v1642
    %v1916 = vpack.c.b16 %v1657, %v1650
    %v1917 = vpack.c.b16 %v1658, %v1651
    %v1918 = vpack.c.b16 %v1659, %v1652
    %v1919 = vpack.c.b16 %v1660, %v1653
    %v1920 = vpack.c.b16 %v1661, %v1654
    %v1921 = vpack.c.b16 %v1662, %v1655
    %v1922 = vpack.c.b16 %v1663, %v1656
    %v1923 = vpack.c.b16 %v1671, %v1664
    %v1924 = vpack.c.b16 %v1672, %v1665
    %v1925 = vpack.c.b16 %v1673, %v1666
    %v1926 = vpack.c.b16 %v1674, %v1667
    %v1927 = vpack.c.b16 %v1675, %v1668
    %v1928 = vpack.c.b16 %v1676, %v1669
    %v1929 = vpack.c.b16 %v1677, %v1670
    %v1930 = vpack.c.b16 %v1685, %v1678
    %v1931 = vpack.c.b16 %v1686, %v1679
    %v1932 = vpack.c.b16 %v1687, %v1680
    %v1933 = vpack.c.b16 %v1688, %v1681
    %v1934 = vpack.c.b16 %v1689, %v1682
    %v1935 = vpack.c.b16 %v1690, %v1683
    %v1936 = vpack.c.b16 %v1691, %v1684
    %v1937 = vpack.c.b16 %v1699, %v1692
    %v1938 = vpack.c.b16 %v1700, %v1693
    %v1939 = vpack.c.b16 %v1701, %v1694
    %v1940 = vpack.c.b16 %v1702, %v1695
    %v1941 = vpack.c.b16 %v1703, %v1696
    %v1942 = vpack.c.b16 %v1704, %v1697
    %v1943 = vpack.c.b16 %v1705, %v1698
    %v1944 = vpack.c.b16 %v1713, %v1706
    %v1945 = vpack.c.b16 %v1714, %v1707
    %v1946 = vpack.c.b16 %v1715, %v1708
    %v1947 = vpack.c.b16 %v1716, %v1709
    %v1948 = vpack.c.b16 %v1717, %v1710
    %v1949 = vpack.c.b16 %v1718, %v1711
    %v1950 = vpack.c.b16 %v1719, %v1712
    %v1951 = vpack.c.b16 %v1727, %v1720
    %v1952 = vpack.c.b16 %v1728, %v1721
    %v1953 = vpack.c.b16 %v1729, %v1722
    %v1954 = vpack.c.b16 %v1730, %v1723
    %v1955 = vpack.c.b16 %v1731, %v1724
    %v1956 = vpack.c.b16 %v1732, %v1725
    %v1957 = vpack.c.b16 %v1733, %v1726
    %2182 = vmatprep.subr.bf16.mxu0 %v1784
    %2183 = vmatpush1.bf16.msra.mxu0 %v1783
    %2184 = vmatprep.subr.bf16.mxu0 %v1777
    %2185 = vmatpush1.bf16.msra.mxu0 %v1776
    %2186 = vmatprep.subr.bf16.mxu0 %v1770
    %2187 = vmatpush1.bf16.msra.mxu0 %v1769
    %2188 = vmatprep.subr.bf16.mxu0 %v1763
    %2189 = vmatpush1.bf16.msra.mxu0 %v1762
    %2190 = vmatprep.subr.bf16.mxu0 %v1756
    %2191 = vmatpush1.bf16.msra.mxu0 %v1755
    %2192 = vmatprep.subr.bf16.mxu0 %v1749
    %2193 = vmatpush1.bf16.msra.mxu0 %v1748
    %2194 = vmatprep.subr.bf16.mxu0 %v1742
    %2195 = vmatpush1.bf16.msra.mxu0 %v1741
    %2196 = vmatprep.subr.bf16.mxu0 %v1735
    %2197 = vmatpush1.bf16.msra.mxu0 %v1734
    %2198 = vmatprep.subr.bf16.mxu0 %v1840
    %2199 = vmatpush2.bf16.msra.mxu0 %v1839
    %2200 = vmatprep.subr.bf16.mxu0 %v1833
    %2201 = vmatpush2.bf16.msra.mxu0 %v1832
    %2202 = vmatprep.subr.bf16.mxu0 %v1826
    %2203 = vmatpush2.bf16.msra.mxu0 %v1825
    %2204 = vmatprep.subr.bf16.mxu0 %v1819
    %2205 = vmatpush2.bf16.msra.mxu0 %v1818
    %2206 = vmatprep.subr.bf16.mxu0 %v1812
    %2207 = vmatpush2.bf16.msra.mxu0 %v1811
    %2208 = vmatprep.subr.bf16.mxu0 %v1805
    %2209 = vmatpush2.bf16.msra.mxu0 %v1804
    %2210 = vmatprep.subr.bf16.mxu0 %v1798
    %2211 = vmatpush2.bf16.msra.mxu0 %v1797
    %2212 = vmatprep.subr.bf16.mxu0 %v1791
    %2213 = vmatpush2.bf16.msra.mxu0 %v1790
    %2214 = vmatprep.mubr.bf16.mxu0 %v734
    %2215 = vmatmul.mubr.bf16.gmra.mxu0 %v733
    %v2216 = vpop.f32.mrf.mxu0
    %v2217 = vadd.f32 %v998, %v2216
    %v2218 = vpop.f32.mrf.mxu0
    %v2219 = vadd.f32 %v1002, %v2218
    %v2220 = vpop.f32.mrf.mxu0
    %v2221 = vadd.f32 %v998, %v2220
    %v2222 = vpop.f32.mrf.mxu0
    %v2223 = vadd.f32 %v1002, %v2222
    %2224 = vdwg.mxu0
    %2225 = vmatprep.subr.bf16.mxu0 %v1896
    %2226 = vmatpush1.bf16.msra.mxu0 %v1895
    %2227 = vmatprep.subr.bf16.mxu0 %v1889
    %2228 = vmatpush1.bf16.msra.mxu0 %v1888
    %2229 = vmatprep.subr.bf16.mxu0 %v1882
    %2230 = vmatpush1.bf16.msra.mxu0 %v1881
    %2231 = vmatprep.subr.bf16.mxu0 %v1875
    %2232 = vmatpush1.bf16.msra.mxu0 %v1874
    %2233 = vmatprep.subr.bf16.mxu0 %v1868
    %2234 = vmatpush1.bf16.msra.mxu0 %v1867
    %2235 = vmatprep.subr.bf16.mxu0 %v1861
    %2236 = vmatpush1.bf16.msra.mxu0 %v1860
    %2237 = vmatprep.subr.bf16.mxu0 %v1854
    %2238 = vmatpush1.bf16.msra.mxu0 %v1853
    %2239 = vmatprep.subr.bf16.mxu0 %v1847
    %2240 = vmatpush1.bf16.msra.mxu0 %v1846
    %2241 = vmatprep.subr.bf16.mxu0 %v1952
    %2242 = vmatpush2.bf16.msra.mxu0 %v1951
    %2243 = vmatprep.subr.bf16.mxu0 %v1945
    %2244 = vmatpush2.bf16.msra.mxu0 %v1944
    %2245 = vmatprep.subr.bf16.mxu0 %v1938
    %2246 = vmatpush2.bf16.msra.mxu0 %v1937
    %2247 = vmatprep.subr.bf16.mxu0 %v1931
    %2248 = vmatpush2.bf16.msra.mxu0 %v1930
    %2249 = vmatprep.subr.bf16.mxu0 %v1924
    %2250 = vmatpush2.bf16.msra.mxu0 %v1923
    %2251 = vmatprep.subr.bf16.mxu0 %v1917
    %2252 = vmatpush2.bf16.msra.mxu0 %v1916
    %2253 = vmatprep.subr.bf16.mxu0 %v1910
    %2254 = vmatpush2.bf16.msra.mxu0 %v1909
    %2255 = vmatprep.subr.bf16.mxu0 %v1903
    %2256 = vmatpush2.bf16.msra.mxu0 %v1902
    %2257 = vmatprep.mubr.bf16.mxu0 %v736
    %2258 = vmatmul.mubr.bf16.gmra.mxu0 %v735
    %v2259 = vpop.f32.mrf.mxu0
    %v2260 = vadd.f32 %v2217, %v2259
    %v2261 = vpop.f32.mrf.mxu0
    %v2262 = vadd.f32 %v2219, %v2261
    %v2263 = vpop.f32.mrf.mxu0
    %v2264 = vadd.f32 %v2221, %v2263
    %v2265 = vpop.f32.mrf.mxu0
    %v2266 = vadd.f32 %v2223, %v2265
    %2267 = vdwg.mxu0
    %2268 = vmatprep.subr.bf16.mxu0 %v1786
    %2269 = vmatpush1.bf16.msra.mxu0 %v1785
    %2270 = vmatprep.subr.bf16.mxu0 %v1779
    %2271 = vmatpush1.bf16.msra.mxu0 %v1778
    %2272 = vmatprep.subr.bf16.mxu0 %v1772
    %2273 = vmatpush1.bf16.msra.mxu0 %v1771
    %2274 = vmatprep.subr.bf16.mxu0 %v1765
    %2275 = vmatpush1.bf16.msra.mxu0 %v1764
    %2276 = vmatprep.subr.bf16.mxu0 %v1758
    %2277 = vmatpush1.bf16.msra.mxu0 %v1757
    %2278 = vmatprep.subr.bf16.mxu0 %v1751
    %2279 = vmatpush1.bf16.msra.mxu0 %v1750
    %2280 = vmatprep.subr.bf16.mxu0 %v1744
    %2281 = vmatpush1.bf16.msra.mxu0 %v1743
    %2282 = vmatprep.subr.bf16.mxu0 %v1737
    %2283 = vmatpush1.bf16.msra.mxu0 %v1736
    %2284 = vmatprep.subr.bf16.mxu0 %v1842
    %2285 = vmatpush2.bf16.msra.mxu0 %v1841
    %2286 = vmatprep.subr.bf16.mxu0 %v1835
    %2287 = vmatpush2.bf16.msra.mxu0 %v1834
    %2288 = vmatprep.subr.bf16.mxu0 %v1828
    %2289 = vmatpush2.bf16.msra.mxu0 %v1827
    %2290 = vmatprep.subr.bf16.mxu0 %v1821
    %2291 = vmatpush2.bf16.msra.mxu0 %v1820
    %2292 = vmatprep.subr.bf16.mxu0 %v1814
    %2293 = vmatpush2.bf16.msra.mxu0 %v1813
    %2294 = vmatprep.subr.bf16.mxu0 %v1807
    %2295 = vmatpush2.bf16.msra.mxu0 %v1806
    %2296 = vmatprep.subr.bf16.mxu0 %v1800
    %2297 = vmatpush2.bf16.msra.mxu0 %v1799
    %2298 = vmatprep.subr.bf16.mxu0 %v1793
    %2299 = vmatpush2.bf16.msra.mxu0 %v1792
    %2300 = vmatprep.mubr.bf16.mxu0 %v734
    %2301 = vmatmul.mubr.bf16.gmra.mxu0 %v733
    %v2302 = vpop.f32.mrf.mxu0
    %v2303 = vadd.f32 %v1006, %v2302
    %v2304 = vpop.f32.mrf.mxu0
    %v2305 = vadd.f32 %v1010, %v2304
    %v2306 = vpop.f32.mrf.mxu0
    %v2307 = vadd.f32 %v1006, %v2306
    %v2308 = vpop.f32.mrf.mxu0
    %v2309 = vadd.f32 %v1010, %v2308
    %2310 = vdwg.mxu0
    %2311 = vmatprep.subr.bf16.mxu0 %v1898
    %2312 = vmatpush1.bf16.msra.mxu0 %v1897
    %2313 = vmatprep.subr.bf16.mxu0 %v1891
    %2314 = vmatpush1.bf16.msra.mxu0 %v1890
    %2315 = vmatprep.subr.bf16.mxu0 %v1884
    %2316 = vmatpush1.bf16.msra.mxu0 %v1883
    %2317 = vmatprep.subr.bf16.mxu0 %v1877
    %2318 = vmatpush1.bf16.msra.mxu0 %v1876
    %2319 = vmatprep.subr.bf16.mxu0 %v1870
    %2320 = vmatpush1.bf16.msra.mxu0 %v1869
    %2321 = vmatprep.subr.bf16.mxu0 %v1863
    %2322 = vmatpush1.bf16.msra.mxu0 %v1862
    %2323 = vmatprep.subr.bf16.mxu0 %v1856
    %2324 = vmatpush1.bf16.msra.mxu0 %v1855
    %2325 = vmatprep.subr.bf16.mxu0 %v1849
    %2326 = vmatpush1.bf16.msra.mxu0 %v1848
    %2327 = vmatprep.subr.bf16.mxu0 %v1954
    %2328 = vmatpush2.bf16.msra.mxu0 %v1953
    %2329 = vmatprep.subr.bf16.mxu0 %v1947
    %2330 = vmatpush2.bf16.msra.mxu0 %v1946
    %2331 = vmatprep.subr.bf16.mxu0 %v1940
    %2332 = vmatpush2.bf16.msra.mxu0 %v1939
    %2333 = vmatprep.subr.bf16.mxu0 %v1933
    %2334 = vmatpush2.bf16.msra.mxu0 %v1932
    %2335 = vmatprep.subr.bf16.mxu0 %v1926
    %2336 = vmatpush2.bf16.msra.mxu0 %v1925
    %2337 = vmatprep.subr.bf16.mxu0 %v1919
    %2338 = vmatpush2.bf16.msra.mxu0 %v1918
    %2339 = vmatprep.subr.bf16.mxu0 %v1912
    %2340 = vmatpush2.bf16.msra.mxu0 %v1911
    %2341 = vmatprep.subr.bf16.mxu0 %v1905
    %2342 = vmatpush2.bf16.msra.mxu0 %v1904
    %2343 = vmatprep.mubr.bf16.mxu0 %v736
    %2344 = vmatmul.mubr.bf16.gmra.mxu0 %v735
    %v2345 = vpop.f32.mrf.mxu0
    %v2346 = vadd.f32 %v2303, %v2345
    %v2347 = vpop.f32.mrf.mxu0
    %v2348 = vadd.f32 %v2305, %v2347
    %v2349 = vpop.f32.mrf.mxu0
    %v2350 = vadd.f32 %v2307, %v2349
    %v2351 = vpop.f32.mrf.mxu0
    %v2352 = vadd.f32 %v2309, %v2351
    %2353 = vdwg.mxu0
    %2354 = vmatprep.subr.bf16.mxu0 %v1788
    %2355 = vmatpush1.bf16.msra.mxu0 %v1787
    %2356 = vmatprep.subr.bf16.mxu0 %v1781
    %2357 = vmatpush1.bf16.msra.mxu0 %v1780
    %2358 = vmatprep.subr.bf16.mxu0 %v1774
    %2359 = vmatpush1.bf16.msra.mxu0 %v1773
    %2360 = vmatprep.subr.bf16.mxu0 %v1767
    %2361 = vmatpush1.bf16.msra.mxu0 %v1766
    %2362 = vmatprep.subr.bf16.mxu0 %v1760
    %2363 = vmatpush1.bf16.msra.mxu0 %v1759
    %2364 = vmatprep.subr.bf16.mxu0 %v1753
    %2365 = vmatpush1.bf16.msra.mxu0 %v1752
    %2366 = vmatprep.subr.bf16.mxu0 %v1746
    %2367 = vmatpush1.bf16.msra.mxu0 %v1745
    %2368 = vmatprep.subr.bf16.mxu0 %v1739
    %2369 = vmatpush1.bf16.msra.mxu0 %v1738
    %2370 = vmatprep.subr.bf16.mxu0 %v1844
    %2371 = vmatpush2.bf16.msra.mxu0 %v1843
    %2372 = vmatprep.subr.bf16.mxu0 %v1837
    %2373 = vmatpush2.bf16.msra.mxu0 %v1836
    %2374 = vmatprep.subr.bf16.mxu0 %v1830
    %2375 = vmatpush2.bf16.msra.mxu0 %v1829
    %2376 = vmatprep.subr.bf16.mxu0 %v1823
    %2377 = vmatpush2.bf16.msra.mxu0 %v1822
    %2378 = vmatprep.subr.bf16.mxu0 %v1816
    %2379 = vmatpush2.bf16.msra.mxu0 %v1815
    %2380 = vmatprep.subr.bf16.mxu0 %v1809
    %2381 = vmatpush2.bf16.msra.mxu0 %v1808
    %2382 = vmatprep.subr.bf16.mxu0 %v1802
    %2383 = vmatpush2.bf16.msra.mxu0 %v1801
    %2384 = vmatprep.subr.bf16.mxu0 %v1795
    %2385 = vmatpush2.bf16.msra.mxu0 %v1794
    %2386 = vmatprep.mubr.bf16.mxu0 %v734
    %2387 = vmatmul.mubr.bf16.gmra.mxu0 %v733
    %v2388 = vpop.f32.mrf.mxu0
    %v2389 = vadd.f32 %v1014, %v2388
    %v2390 = vpop.f32.mrf.mxu0
    %v2391 = vadd.f32 %v1018, %v2390
    %v2392 = vpop.f32.mrf.mxu0
    %v2393 = vadd.f32 %v1014, %v2392
    %v2394 = vpop.f32.mrf.mxu0
    %v2395 = vadd.f32 %v1018, %v2394
    %2396 = vdwg.mxu0
    %2397 = vmatprep.subr.bf16.mxu0 %v1900
    %2398 = vmatpush1.bf16.msra.mxu0 %v1899
    %2399 = vmatprep.subr.bf16.mxu0 %v1893
    %2400 = vmatpush1.bf16.msra.mxu0 %v1892
    %2401 = vmatprep.subr.bf16.mxu0 %v1886
    %2402 = vmatpush1.bf16.msra.mxu0 %v1885
    %2403 = vmatprep.subr.bf16.mxu0 %v1879
    %2404 = vmatpush1.bf16.msra.mxu0 %v1878
    %2405 = vmatprep.subr.bf16.mxu0 %v1872
    %2406 = vmatpush1.bf16.msra.mxu0 %v1871
    %2407 = vmatprep.subr.bf16.mxu0 %v1865
    %2408 = vmatpush1.bf16.msra.mxu0 %v1864
    %2409 = vmatprep.subr.bf16.mxu0 %v1858
    %2410 = vmatpush1.bf16.msra.mxu0 %v1857
    %2411 = vmatprep.subr.bf16.mxu0 %v1851
    %2412 = vmatpush1.bf16.msra.mxu0 %v1850
    %2413 = vmatprep.subr.bf16.mxu0 %v1956
    %2414 = vmatpush2.bf16.msra.mxu0 %v1955
    %2415 = vmatprep.subr.bf16.mxu0 %v1949
    %2416 = vmatpush2.bf16.msra.mxu0 %v1948
    %2417 = vmatprep.subr.bf16.mxu0 %v1942
    %2418 = vmatpush2.bf16.msra.mxu0 %v1941
    %2419 = vmatprep.subr.bf16.mxu0 %v1935
    %2420 = vmatpush2.bf16.msra.mxu0 %v1934
    %2421 = vmatprep.subr.bf16.mxu0 %v1928
    %2422 = vmatpush2.bf16.msra.mxu0 %v1927
    %2423 = vmatprep.subr.bf16.mxu0 %v1921
    %2424 = vmatpush2.bf16.msra.mxu0 %v1920
    %2425 = vmatprep.subr.bf16.mxu0 %v1914
    %2426 = vmatpush2.bf16.msra.mxu0 %v1913
    %2427 = vmatprep.subr.bf16.mxu0 %v1907
    %2428 = vmatpush2.bf16.msra.mxu0 %v1906
    %2429 = vmatprep.mubr.bf16.mxu0 %v736
    %2430 = vmatmul.mubr.bf16.gmra.mxu0 %v735
    %v2431 = vpop.f32.mrf.mxu0
    %v2432 = vadd.f32 %v2389, %v2431
    %v2433 = vpop.f32.mrf.mxu0
    %v2434 = vadd.f32 %v2391, %v2433
    %v2435 = vpop.f32.mrf.mxu0
    %v2436 = vadd.f32 %v2393, %v2435
    %v2437 = vpop.f32.mrf.mxu0
    %v2438 = vadd.f32 %v2395, %v2437
    %2439 = vdwg.mxu0
    %2440 = vmatprep.subr.bf16.mxu0 0
    %2441 = vmatpush1.bf16.msra.mxu0 %v1789
    %2442 = vmatprep.subr.bf16.mxu0 0
    %2443 = vmatpush1.bf16.msra.mxu0 %v1782
    %2444 = vmatprep.subr.bf16.mxu0 0
    %2445 = vmatpush1.bf16.msra.mxu0 %v1775
    %2446 = vmatprep.subr.bf16.mxu0 0
    %2447 = vmatpush1.bf16.msra.mxu0 %v1768
    %2448 = vmatprep.subr.bf16.mxu0 0
    %2449 = vmatpush1.bf16.msra.mxu0 %v1761
    %2450 = vmatprep.subr.bf16.mxu0 0
    %2451 = vmatpush1.bf16.msra.mxu0 %v1754
    %2452 = vmatprep.subr.bf16.mxu0 0
    %2453 = vmatpush1.bf16.msra.mxu0 %v1747
    %2454 = vmatprep.subr.bf16.mxu0 0
    %2455 = vmatpush1.bf16.msra.mxu0 %v1740
    %2456 = vmatprep.subr.bf16.mxu0 0
    %2457 = vmatpush2.bf16.msra.mxu0 %v1845
    %2458 = vmatprep.subr.bf16.mxu0 0
    %2459 = vmatpush2.bf16.msra.mxu0 %v1838
    %2460 = vmatprep.subr.bf16.mxu0 0
    %2461 = vmatpush2.bf16.msra.mxu0 %v1831
    %2462 = vmatprep.subr.bf16.mxu0 0
    %2463 = vmatpush2.bf16.msra.mxu0 %v1824
    %2464 = vmatprep.subr.bf16.mxu0 0
    %2465 = vmatpush2.bf16.msra.mxu0 %v1817
    %2466 = vmatprep.subr.bf16.mxu0 0
    %2467 = vmatpush2.bf16.msra.mxu0 %v1810
    %2468 = vmatprep.subr.bf16.mxu0 0
    %2469 = vmatpush2.bf16.msra.mxu0 %v1803
    %2470 = vmatprep.subr.bf16.mxu0 0
    %2471 = vmatpush2.bf16.msra.mxu0 %v1796
    %2472 = vmatprep.mubr.bf16.mxu0 %v734
    %2473 = vmatmul.mubr.bf16.gmra.mxu0 %v733
    %v2474 = vpop.f32.mrf.mxu0
    %v2475 = vadd.f32 %v1022, %v2474
    %v2476 = vpop.f32.mrf.mxu0
    %v2477 = vpop.f32.mrf.mxu0
    %v2478 = vadd.f32 %v1022, %v2477
    %v2479 = vpop.f32.mrf.mxu0
    %2480 = vdwg.mxu0
    %2481 = vmatprep.subr.bf16.mxu0 0
    %2482 = vmatpush1.bf16.msra.mxu0 %v1901
    %2483 = vmatprep.subr.bf16.mxu0 0
    %2484 = vmatpush1.bf16.msra.mxu0 %v1894
    %2485 = vmatprep.subr.bf16.mxu0 0
    %2486 = vmatpush1.bf16.msra.mxu0 %v1887
    %2487 = vmatprep.subr.bf16.mxu0 0
    %2488 = vmatpush1.bf16.msra.mxu0 %v1880
    %2489 = vmatprep.subr.bf16.mxu0 0
    %2490 = vmatpush1.bf16.msra.mxu0 %v1873
    %2491 = vmatprep.subr.bf16.mxu0 0
    %2492 = vmatpush1.bf16.msra.mxu0 %v1866
    %2493 = vmatprep.subr.bf16.mxu0 0
    %2494 = vmatpush1.bf16.msra.mxu0 %v1859
    %2495 = vmatprep.subr.bf16.mxu0 0
    %2496 = vmatpush1.bf16.msra.mxu0 %v1852
    %2497 = vmatprep.subr.bf16.mxu0 0
    %2498 = vmatpush2.bf16.msra.mxu0 %v1957
    %2499 = vmatprep.subr.bf16.mxu0 0
    %2500 = vmatpush2.bf16.msra.mxu0 %v1950
    %2501 = vmatprep.subr.bf16.mxu0 0
    %2502 = vmatpush2.bf16.msra.mxu0 %v1943
    %2503 = vmatprep.subr.bf16.mxu0 0
    %2504 = vmatpush2.bf16.msra.mxu0 %v1936
    %2505 = vmatprep.subr.bf16.mxu0 0
    %2506 = vmatpush2.bf16.msra.mxu0 %v1929
    %2507 = vmatprep.subr.bf16.mxu0 0
    %2508 = vmatpush2.bf16.msra.mxu0 %v1922
    %2509 = vmatprep.subr.bf16.mxu0 0
    %2510 = vmatpush2.bf16.msra.mxu0 %v1915
    %2511 = vmatprep.subr.bf16.mxu0 0
    %2512 = vmatpush2.bf16.msra.mxu0 %v1908
    %2513 = vmatprep.mubr.bf16.mxu0 %v736
    %2514 = vmatmul.mubr.bf16.gmra.mxu0 %v735
    %v2515 = vpop.f32.mrf.mxu0
    %v2516 = vadd.f32 %v2475, %v2515
    %v2517 = vpop.f32.mrf.mxu0
    %v2518 = vpop.f32.mrf.mxu0
    %v2519 = vadd.f32 %v2478, %v2518
    %v2520 = vpop.f32.mrf.mxu0
    %2521 = vdwg.mxu0
    %v2522 = vtanh.pop %v2260
    %v2523 = vtanh.pop %v2262
    %v2524 = vtanh.pop %v2346
    %v2525 = vtanh.pop %v2348
    %v2526 = vtanh.pop %v2432
    %v2527 = vtanh.pop %v2434
    %v2528 = vtanh.pop %v2516
    %v2529 = vtanh.pop %v2264
    %v2530 = vtanh.pop %v2266
    %v2531 = vtanh.pop %v2350
    %v2532 = vtanh.pop %v2352
    %v2533 = vtanh.pop %v2436
    %v2534 = vtanh.pop %v2438
    %v2535 = vtanh.pop %v2519
    %v2536 = vpack.c.bf16 %v2529, %v2522
    %v2537 = vpack.c.bf16 %v2530, %v2523
    %v2538 = vpack.c.bf16 %v2531, %v2524
    %v2539 = vpack.c.bf16 %v2532, %v2525
    %v2540 = vpack.c.bf16 %v2533, %v2526
    %v2541 = vpack.c.bf16 %v2534, %v2527
    %v2542 = vpack.c.bf16 %v2535, %v2528
    %v2550 = vunpack.c.l.b16 %v2536
    %v2551 = vunpack.c.l.b16 %v2537
    %v2552 = vunpack.c.l.b16 %v2538
    %v2553 = vunpack.c.l.b16 %v2539
    %v2554 = vunpack.c.l.b16 %v2540
    %v2555 = vunpack.c.l.b16 %v2541
    %v2556 = vunpack.c.l.b16 %v2542
    %v2557 = vunpack.c.h.b16 %v2536
    %v2558 = vunpack.c.h.b16 %v2537
    %v2559 = vunpack.c.h.b16 %v2538
    %v2560 = vunpack.c.h.b16 %v2539
    %v2561 = vunpack.c.h.b16 %v2540
    %v2562 = vunpack.c.h.b16 %v2541
    %v2563 = vunpack.c.h.b16 %v2542
    %v2564 = vpack.c.b16 %v2551, %v2550
    %v2565 = vpack.c.b16 %v2553, %v2552
    %v2566 = vpack.c.b16 %v2555, %v2554
    %v2567 = vpack.c.b16 %v2556, %v2556
    %v2568 = vpack.c.b16 %v2558, %v2557
    %v2569 = vpack.c.b16 %v2560, %v2559
    %v2570 = vpack.c.b16 %v2562, %v2561
    %v2571 = vpack.c.b16 %v2563, %v2563
    %2580 = vst [vmem:[%s7] sm:$0xff] %v2564
    %2581 = vst [vmem:[%s7 + $0x8] sm:$0xff] %v2565
    %2582 = vst [vmem:[%s7 + $0x10] sm:$0xff] %v2566
    %2583 = vst [vmem:[%s7 + $0x18] sm:$0xf] %v2567
    %2584 = vst [vmem:[%s7 + $0x1c] sm:$0xff] %v2568
    %2585 = vst [vmem:[%s7 + $0x24] sm:$0xff] %v2569
    %2586 = vst [vmem:[%s7 + $0x2c] sm:$0xff] %v2570
    %2587 = vst [vmem:[%s7 + $0x34] sm:$0xf] %v2571
    // Predicated region
    $region42: #{generator_forward.1} parent=1 // pred_check
      _
    $region43: #{generator_forward.1} parent=1 // pred_check_branch
      %2589 = sbr.rel (0) target = $region45
    $region44: #{generator_forward.1} parent=1 // pred_region
      _
    $region45: #{generator_forward.1} parent=1 // pred_fallthru
      _
    // Predicated region
    $region46: #{generator_forward.1} parent=1 // pred_check
      _
    $region47: #{generator_forward.1} parent=1 // pred_check_branch
      %2591 = sbr.rel (0) target = $region49
    $region48: #{generator_forward.1} parent=1 // pred_region
      _
    $region49: #{generator_forward.1} parent=1 // pred_fallthru
      _
    %2592 = vsyncpa [#allocation3], 1
    %2593 = vsyncpa [#allocation5], 1

</llo_original>
